<compile_context>
chip_gen: v6e
topology: v6e:2x2x1
jax: 0.10.0
libtpu: 0.0.40
codegen_flags: <defaults>
</compile_context>

<pallas_src>
import math
import functools

import jax
import jax.numpy as jnp
from jax.experimental import pallas as pl
from jax.experimental.pallas import tpu as pltpu


# ----------------------------- fused ISAB kernel -----------------------------
def _mab_block(X_kv, X_q, wq, wkv, wo, b, *, num_heads, dim_V):
    """One MAB on a single batch element.

    X_kv: (Nk, dim_K)  -- used for both K and V (they are identical in ISAB)
    X_q : (Nq, dim_Q)
    wq  : (dim_Q, dim_V)
    wkv : (2, dim_K, dim_V)   rows = [Wk, Wv]
    wo  : (dim_V, dim_V)
    b   : (4, dim_V)          rows = [bq, bk, bv, bo]
    returns (Nq, dim_V) float32
    """
    Qp = jnp.dot(X_q, wq, preferred_element_type=jnp.float32) + b[0:1, :]
    Kp = jnp.dot(X_kv, wkv[0], preferred_element_type=jnp.float32) + b[1:2, :]
    Vp = jnp.dot(X_kv, wkv[1], preferred_element_type=jnp.float32) + b[2:3, :]

    Nq = Qp.shape[0]
    ds = dim_V // num_heads
    scale = 1.0 / math.sqrt(dim_V)   # NOTE: sqrt(dim_V), matching the PyTorch MAB

    # Head-stacked, batch-leading layout (H, Nq/Nk, ds); bf16 MXU operands,
    # f32 accumulation.
    Qh = jnp.stack([Qp[:, h * ds:(h + 1) * ds] for h in range(num_heads)],
                   axis=0).astype(jnp.bfloat16)
    Kh = jnp.stack([Kp[:, h * ds:(h + 1) * ds] for h in range(num_heads)],
                   axis=0).astype(jnp.bfloat16)
    Vh = jnp.stack([Vp[:, h * ds:(h + 1) * ds] for h in range(num_heads)],
                   axis=0).astype(jnp.bfloat16)

    S = jnp.einsum("hqd,hkd->hqk", Qh, Kh,
                   preferred_element_type=jnp.float32) * scale      # (H, Nq, Nk)
    S = S - jnp.max(S, axis=-1, keepdims=True)                      # f32 softmax
    E = jnp.exp(S)
    inv = pl.reciprocal(jnp.sum(E, axis=-1, keepdims=True), approx=True)
    A = (E * inv).astype(jnp.bfloat16)

    AV = jnp.einsum("hqk,hkd->hqd", A, Vh,
                    preferred_element_type=jnp.float32)              # (H, Nq, ds)

    # Residual: projected Q + per-head attention output, heads back on lanes.
    O = Qp + jnp.concatenate([AV[h] for h in range(num_heads)], axis=-1)

    # O = O + relu(fc_o(O))   (ln=False -> no LayerNorm)
    O = O + jnp.maximum(
        jnp.dot(O, wo, preferred_element_type=jnp.float32) + b[3:4, :], 0.0)
    return O


def _isab_kernel(x_ref, i_ref,
                 wq0_ref, wkv0_ref, wo0_ref, b0_ref,
                 wq1_ref, wkv1_ref, wo1_ref, b1_ref,
                 o_ref, *, num_heads, dim_V):
    X = x_ref[0]      # (N, dim_in)     -- K and V for mab0, Q for mab1
    I = i_ref[0]      # (num_inds, dim_out)

    # H = MAB0(K=X, V=X, Q=I); stays in VMEM/vregs, never written to HBM.
    H = _mab_block(X, I, wq0_ref[...], wkv0_ref[...], wo0_ref[...], b0_ref[...],
                   num_heads=num_heads, dim_V=dim_V)
    # out = MAB1(K=H, V=H, Q=X)
    O = _mab_block(H, X, wq1_ref[...], wkv1_ref[...], wo1_ref[...], b1_ref[...],
                   num_heads=num_heads, dim_V=dim_V)

    o_ref[0] = O.astype(o_ref.dtype)


def isab_forward(X, params, num_heads):
    """ISAB forward: X (B, N, dim_in) -> (B, N, dim_out). Single fused kernel."""
    B, N, dim_in = X.shape
    I = params["I"]                      # (1, num_inds, dim_out) -- NOT broadcast
    num_inds, dim_V = I.shape[1], I.shape[2]
    m0, m1 = params["mab0"], params["mab1"]

    kernel = functools.partial(_isab_kernel, num_heads=num_heads, dim_V=dim_V)

    return pl.pallas_call(
        kernel,
        out_shape=jax.ShapeDtypeStruct((B, N, dim_V), jnp.float32),
        grid=(B,),
        in_specs=[
            pl.BlockSpec((1, N, dim_in), lambda b: (b, 0, 0)),        # X
            pl.BlockSpec((1, num_inds, dim_V), lambda b: (0, 0, 0)),  # I (resident)
            pl.BlockSpec((dim_V, dim_V), lambda b: (0, 0)),           # mab0 Wq (dim_Q=dim_out)
            pl.BlockSpec((2, dim_in, dim_V), lambda b: (0, 0, 0)),    # mab0 [Wk, Wv]
            pl.BlockSpec((dim_V, dim_V), lambda b: (0, 0)),           # mab0 Wo
            pl.BlockSpec((4, dim_V), lambda b: (0, 0)),               # mab0 [bq,bk,bv,bo]
            pl.BlockSpec((dim_in, dim_V), lambda b: (0, 0)),          # mab1 Wq (dim_Q=dim_in)
            pl.BlockSpec((2, dim_V, dim_V), lambda b: (0, 0, 0)),     # mab1 [Wk, Wv]
            pl.BlockSpec((dim_V, dim_V), lambda b: (0, 0)),           # mab1 Wo
            pl.BlockSpec((4, dim_V), lambda b: (0, 0)),               # mab1 [bq,bk,bv,bo]
        ],
        out_specs=pl.BlockSpec((1, N, dim_V), lambda b: (b, 0, 0)),
        compiler_params=pltpu.CompilerParams(
            dimension_semantics=("parallel",)),   # batch shards across v7x's 2 TCs
    )(X, I,
      m0["wq"], m0["wkv"], m0["wo"], m0["b"],
      m1["wq"], m1["wkv"], m1["wo"], m1["b"])


# ---------------- parameter construction (deterministic, synthetic) ----------
def _linear_params(key, din, dout):
    kw, kb = jax.random.split(key)
    lim = 1.0 / math.sqrt(din)
    w = jax.random.uniform(kw, (din, dout), jnp.float32, -lim, lim)  # (in, out)
    b = jax.random.uniform(kb, (dout,), jnp.float32, -lim, lim)
    return w, b


def _mab_params(key, dim_Q, dim_K, dim_V):
    ks = jax.random.split(key, 4)
    wq, bq = _linear_params(ks[0], dim_Q, dim_V)
    wk, bk = _linear_params(ks[1], dim_K, dim_V)
    wv, bv = _linear_params(ks[2], dim_K, dim_V)
    wo, bo = _linear_params(ks[3], dim_V, dim_V)
    return dict(wq=wq,
                wkv=jnp.stack([wk, wv], axis=0),          # (2, dim_K, dim_V)
                wo=wo,
                b=jnp.stack([bq, bk, bv, bo], axis=0))    # (4, dim_V)


def make_isab_params(key, dim_in, dim_out, num_inds):
    k_i, k0, k1 = jax.random.split(key, 3)
    # xavier_uniform for I: fan_in=num_inds, fan_out=dim_out
    lim = math.sqrt(6.0 / (num_inds + dim_out))
    I = jax.random.uniform(k_i, (1, num_inds, dim_out), jnp.float32, -lim, lim)
    return dict(
        I=I,
        mab0=_mab_params(k0, dim_out, dim_in, dim_out),   # Q=I(dim_out), K=X(dim_in)
        mab1=_mab_params(k1, dim_in, dim_out, dim_out),   # Q=X(dim_in),  K=H(dim_out)
    )


# ---------------- pure-JAX reference (for correctness check) -----------------
def _mab_ref(Kv, Q, p, num_heads):
    dim_V = p["wq"].shape[1]
    Qp = Q @ p["wq"] + p["b"][0]
    Kp = Kv @ p["wkv"][0] + p["b"][1]
    Vp = Kv @ p["wkv"][1] + p["b"][2]
    ds = dim_V // num_heads
    outs = []
    for h in range(num_heads):
        Qh = Qp[..., h * ds:(h + 1) * ds]
        Kh = Kp[..., h * ds:(h + 1) * ds]
        Vh = Vp[..., h * ds:(h + 1) * ds]
        S = jnp.einsum("bqd,bkd->bqk", Qh, Kh) / math.sqrt(dim_V)
        A = jax.nn.softmax(S, axis=-1)
        outs.append(Qh + jnp.einsum("bqk,bkd->bqd", A, Vh))
    O = jnp.concatenate(outs, axis=-1)
    return O + jax.nn.relu(O @ p["wo"] + p["b"][3])


def _isab_ref(X, params, num_heads):
    B = X.shape[0]
    I = jnp.broadcast_to(params["I"], (B,) + params["I"].shape[1:])
    H = _mab_ref(X, I, params["mab0"], num_heads)
    return _mab_ref(H, X, params["mab1"], num_heads)


if __name__ == "__main__":
    # Small shapes consistent with the module's forward.
    B, N = 2, 16
    dim_in, dim_out = 32, 32
    num_heads, num_inds = 4, 8

    key = jax.random.PRNGKey(0)
    k_x, k_p = jax.random.split(key)
    X = jax.random.normal(k_x, (B, N, dim_in), jnp.float32)
    params = make_isab_params(k_p, dim_in, dim_out, num_inds)

    out = isab_forward(X, params, num_heads)
    out = jax.block_until_ready(out)

    ref = _isab_ref(X, params, num_heads)
    assert out.shape == (B, N, dim_out)
    # Tolerance reflects bf16 MXU operands + approx reciprocal in the kernel
    # (the f32 reference is exact).
    assert jnp.allclose(out, ref, atol=2e-2, rtol=2e-2), "mismatch vs reference"

    print("KERNEL_OK")
</pallas_src>

<mosaic_0001>
module attributes {stable_mosaic.version = 11 : i64} {
  func.func @_isab_kernel(%arg0: i32, %arg1: memref<1x16x32xf32, #tpu.memory_space<vmem>>, %arg2: memref<1x8x32xf32, #tpu.memory_space<vmem>>, %arg3: memref<32x32xf32, #tpu.memory_space<vmem>>, %arg4: memref<2x32x32xf32, #tpu.memory_space<vmem>>, %arg5: memref<32x32xf32, #tpu.memory_space<vmem>>, %arg6: memref<4x32xf32, #tpu.memory_space<vmem>>, %arg7: memref<32x32xf32, #tpu.memory_space<vmem>>, %arg8: memref<2x32x32xf32, #tpu.memory_space<vmem>>, %arg9: memref<32x32xf32, #tpu.memory_space<vmem>>, %arg10: memref<4x32xf32, #tpu.memory_space<vmem>>, %arg11: memref<1x16x32xf32, #tpu.memory_space<vmem>>) attributes {dimension_semantics = [#tpu.dimension_semantics<parallel>], iteration_bounds = array<i64: 2>, scalar_prefetch = 0 : i64, scratch_operands = 0 : i64, tpu.core_type = #tpu.core_type<tc>, window_params = [{transform_indices = @transform_0, window_bounds = array<i64: 1, 16, 32>}, {pipeline_mode = #tpu.pipeline_mode<synchronous>, transform_indices = @transform_1, window_bounds = array<i64: 1, 8, 32>}, {pipeline_mode = #tpu.pipeline_mode<synchronous>, transform_indices = @transform_2, window_bounds = array<i64: 32, 32>}, {pipeline_mode = #tpu.pipeline_mode<synchronous>, transform_indices = @transform_3, window_bounds = array<i64: 2, 32, 32>}, {pipeline_mode = #tpu.pipeline_mode<synchronous>, transform_indices = @transform_4, window_bounds = array<i64: 32, 32>}, {pipeline_mode = #tpu.pipeline_mode<synchronous>, transform_indices = @transform_5, window_bounds = array<i64: 4, 32>}, {pipeline_mode = #tpu.pipeline_mode<synchronous>, transform_indices = @transform_6, window_bounds = array<i64: 32, 32>}, {pipeline_mode = #tpu.pipeline_mode<synchronous>, transform_indices = @transform_7, window_bounds = array<i64: 2, 32, 32>}, {pipeline_mode = #tpu.pipeline_mode<synchronous>, transform_indices = @transform_8, window_bounds = array<i64: 32, 32>}, {pipeline_mode = #tpu.pipeline_mode<synchronous>, transform_indices = @transform_9, window_bounds = array<i64: 4, 32>}, {transform_indices = @transform_10, window_bounds = array<i64: 1, 16, 32>}]} {
    %c0 = arith.constant 0 : index
    %c0_0 = arith.constant 0 : index
    %c0_1 = arith.constant 0 : index
    %0 = vector.load %arg1[%c0, %c0_0, %c0_1] : memref<1x16x32xf32, #tpu.memory_space<vmem>>, vector<1x16x32xf32>
    %1 = vector.shape_cast %0 : vector<1x16x32xf32> to vector<16x32xf32>
    %c0_2 = arith.constant 0 : index
    %c0_3 = arith.constant 0 : index
    %c0_4 = arith.constant 0 : index
    %2 = vector.load %arg2[%c0_2, %c0_3, %c0_4] : memref<1x8x32xf32, #tpu.memory_space<vmem>>, vector<1x8x32xf32>
    %3 = vector.shape_cast %2 : vector<1x8x32xf32> to vector<8x32xf32>
    %c0_5 = arith.constant 0 : index
    %c0_6 = arith.constant 0 : index
    %4 = vector.load %arg3[%c0_5, %c0_6] : memref<32x32xf32, #tpu.memory_space<vmem>>, vector<32x32xf32>
    %c0_7 = arith.constant 0 : index
    %c0_8 = arith.constant 0 : index
    %c0_9 = arith.constant 0 : index
    %5 = vector.load %arg4[%c0_7, %c0_8, %c0_9] : memref<2x32x32xf32, #tpu.memory_space<vmem>>, vector<2x32x32xf32>
    %c0_10 = arith.constant 0 : index
    %c0_11 = arith.constant 0 : index
    %6 = vector.load %arg5[%c0_10, %c0_11] : memref<32x32xf32, #tpu.memory_space<vmem>>, vector<32x32xf32>
    %c0_12 = arith.constant 0 : index
    %c0_13 = arith.constant 0 : index
    %7 = vector.load %arg6[%c0_12, %c0_13] : memref<4x32xf32, #tpu.memory_space<vmem>>, vector<4x32xf32>
    %cst = arith.constant dense<0.000000e+00> : vector<8x32xf32>
    %8 = tpu.matmul %3, %4, %cst {dimension_numbers = #tpu.dot_dimension_numbers<[1], [0], [0], [1], [0, 0, 1, 1], [], []>} : vector<8x32xf32>, vector<32x32xf32>, vector<8x32xf32> -> vector<8x32xf32>
    %9 = vector.extract_strided_slice %7 {offsets = [0, 0], sizes = [1, 32], strides = [1, 1]} : vector<4x32xf32> to vector<1x32xf32>
    %10 = vector.broadcast %9 : vector<1x32xf32> to vector<8x32xf32>
    %11 = arith.addf %8, %10 : vector<8x32xf32>
    %12 = vector.extract_strided_slice %5 {offsets = [0, 0, 0], sizes = [1, 32, 32], strides = [1, 1, 1]} : vector<2x32x32xf32> to vector<1x32x32xf32>
    %13 = vector.shape_cast %12 : vector<1x32x32xf32> to vector<32x32xf32>
    %cst_14 = arith.constant dense<0.000000e+00> : vector<16x32xf32>
    %14 = tpu.matmul %1, %13, %cst_14 {dimension_numbers = #tpu.dot_dimension_numbers<[1], [0], [0], [1], [0, 0, 1, 1], [], []>} : vector<16x32xf32>, vector<32x32xf32>, vector<16x32xf32> -> vector<16x32xf32>
    %15 = vector.extract_strided_slice %7 {offsets = [1, 0], sizes = [1, 32], strides = [1, 1]} : vector<4x32xf32> to vector<1x32xf32>
    %16 = vector.broadcast %15 : vector<1x32xf32> to vector<16x32xf32>
    %17 = arith.addf %14, %16 : vector<16x32xf32>
    %18 = vector.extract_strided_slice %5 {offsets = [1, 0, 0], sizes = [1, 32, 32], strides = [1, 1, 1]} : vector<2x32x32xf32> to vector<1x32x32xf32>
    %19 = vector.shape_cast %18 : vector<1x32x32xf32> to vector<32x32xf32>
    %cst_15 = arith.constant dense<0.000000e+00> : vector<16x32xf32>
    %20 = tpu.matmul %1, %19, %cst_15 {dimension_numbers = #tpu.dot_dimension_numbers<[1], [0], [0], [1], [0, 0, 1, 1], [], []>} : vector<16x32xf32>, vector<32x32xf32>, vector<16x32xf32> -> vector<16x32xf32>
    %21 = vector.extract_strided_slice %7 {offsets = [2, 0], sizes = [1, 32], strides = [1, 1]} : vector<4x32xf32> to vector<1x32xf32>
    %22 = vector.broadcast %21 : vector<1x32xf32> to vector<16x32xf32>
    %23 = arith.addf %20, %22 : vector<16x32xf32>
    %24 = vector.extract_strided_slice %11 {offsets = [0, 0], sizes = [8, 8], strides = [1, 1]} : vector<8x32xf32> to vector<8x8xf32>
    %25 = vector.extract_strided_slice %11 {offsets = [0, 8], sizes = [8, 8], strides = [1, 1]} : vector<8x32xf32> to vector<8x8xf32>
    %26 = vector.extract_strided_slice %11 {offsets = [0, 16], sizes = [8, 8], strides = [1, 1]} : vector<8x32xf32> to vector<8x8xf32>
    %27 = vector.extract_strided_slice %11 {offsets = [0, 24], sizes = [8, 8], strides = [1, 1]} : vector<8x32xf32> to vector<8x8xf32>
    %28 = vector.shape_cast %24 : vector<8x8xf32> to vector<1x8x8xf32>
    %29 = vector.shape_cast %25 : vector<8x8xf32> to vector<1x8x8xf32>
    %30 = vector.shape_cast %26 : vector<8x8xf32> to vector<1x8x8xf32>
    %31 = vector.shape_cast %27 : vector<8x8xf32> to vector<1x8x8xf32>
    %32 = tpu.concatenate %28, %29, %30, %31 in 0 : vector<1x8x8xf32>, vector<1x8x8xf32>, vector<1x8x8xf32>, vector<1x8x8xf32> -> vector<4x8x8xf32>
    %33 = arith.truncf %32 : vector<4x8x8xf32> to vector<4x8x8xbf16>
    %34 = vector.extract_strided_slice %17 {offsets = [0, 0], sizes = [16, 8], strides = [1, 1]} : vector<16x32xf32> to vector<16x8xf32>
    %35 = vector.extract_strided_slice %17 {offsets = [0, 8], sizes = [16, 8], strides = [1, 1]} : vector<16x32xf32> to vector<16x8xf32>
    %36 = vector.extract_strided_slice %17 {offsets = [0, 16], sizes = [16, 8], strides = [1, 1]} : vector<16x32xf32> to vector<16x8xf32>
    %37 = vector.extract_strided_slice %17 {offsets = [0, 24], sizes = [16, 8], strides = [1, 1]} : vector<16x32xf32> to vector<16x8xf32>
    %38 = vector.shape_cast %34 : vector<16x8xf32> to vector<1x16x8xf32>
    %39 = vector.shape_cast %35 : vector<16x8xf32> to vector<1x16x8xf32>
    %40 = vector.shape_cast %36 : vector<16x8xf32> to vector<1x16x8xf32>
    %41 = vector.shape_cast %37 : vector<16x8xf32> to vector<1x16x8xf32>
    %42 = tpu.concatenate %38, %39, %40, %41 in 0 : vector<1x16x8xf32>, vector<1x16x8xf32>, vector<1x16x8xf32>, vector<1x16x8xf32> -> vector<4x16x8xf32>
    %43 = arith.truncf %42 : vector<4x16x8xf32> to vector<4x16x8xbf16>
    %44 = vector.extract_strided_slice %23 {offsets = [0, 0], sizes = [16, 8], strides = [1, 1]} : vector<16x32xf32> to vector<16x8xf32>
    %45 = vector.extract_strided_slice %23 {offsets = [0, 8], sizes = [16, 8], strides = [1, 1]} : vector<16x32xf32> to vector<16x8xf32>
    %46 = vector.extract_strided_slice %23 {offsets = [0, 16], sizes = [16, 8], strides = [1, 1]} : vector<16x32xf32> to vector<16x8xf32>
    %47 = vector.extract_strided_slice %23 {offsets = [0, 24], sizes = [16, 8], strides = [1, 1]} : vector<16x32xf32> to vector<16x8xf32>
    %48 = vector.shape_cast %44 : vector<16x8xf32> to vector<1x16x8xf32>
    %49 = vector.shape_cast %45 : vector<16x8xf32> to vector<1x16x8xf32>
    %50 = vector.shape_cast %46 : vector<16x8xf32> to vector<1x16x8xf32>
    %51 = vector.shape_cast %47 : vector<16x8xf32> to vector<1x16x8xf32>
    %52 = tpu.concatenate %48, %49, %50, %51 in 0 : vector<1x16x8xf32>, vector<1x16x8xf32>, vector<1x16x8xf32>, vector<1x16x8xf32> -> vector<4x16x8xf32>
    %53 = arith.truncf %52 : vector<4x16x8xf32> to vector<4x16x8xbf16>
    "tpu.trace_start"() <{level = 10 : i32, message = "hqd,hkd->hqk"}> : () -> ()
    %cst_16 = arith.constant dense<0.000000e+00> : vector<4x8x16xf32>
    %54 = tpu.matmul %33, %43, %cst_16 {dimension_numbers = #tpu.dot_dimension_numbers<[2], [2], [1], [1], [0, 0, 0, 1, 1, 1], [0], [0]>} : vector<4x8x8xbf16>, vector<4x16x8xbf16>, vector<4x8x16xf32> -> vector<4x8x16xf32>
    "tpu.trace_stop"() : () -> ()
    %cst_17 = arith.constant 0.176776692 : f32
    %55 = vector.broadcast %cst_17 : f32 to vector<4x8x16xf32>
    %56 = arith.mulf %54, %55 : vector<4x8x16xf32>
    %cst_18 = arith.constant dense<0xFF800000> : vector<4x8xf32>
    %57 = vector.multi_reduction <maximumf>, %56, %cst_18 [2] : vector<4x8x16xf32> to vector<4x8xf32>
    %58 = vector.shape_cast %57 : vector<4x8xf32> to vector<4x8x1xf32>
    %59 = vector.broadcast %58 : vector<4x8x1xf32> to vector<4x8x16xf32>
    %60 = arith.subf %56, %59 : vector<4x8x16xf32>
    %61 = math.exp %60 : vector<4x8x16xf32>
    %cst_19 = arith.constant dense<0.000000e+00> : vector<4x8xf32>
    %62 = vector.multi_reduction <add>, %61, %cst_19 [2] : vector<4x8x16xf32> to vector<4x8xf32>
    %63 = vector.shape_cast %62 : vector<4x8xf32> to vector<4x8x1xf32>
    %64 = tpu.reciprocal %63 {approx = true} : vector<4x8x1xf32> -> vector<4x8x1xf32>
    %65 = vector.broadcast %64 : vector<4x8x1xf32> to vector<4x8x16xf32>
    %66 = arith.mulf %61, %65 : vector<4x8x16xf32>
    %67 = arith.truncf %66 : vector<4x8x16xf32> to vector<4x8x16xbf16>
    "tpu.trace_start"() <{level = 10 : i32, message = "hqk,hkd->hqd"}> : () -> ()
    %cst_20 = arith.constant dense<0.000000e+00> : vector<4x8x8xf32>
    %68 = tpu.matmul %67, %53, %cst_20 {dimension_numbers = #tpu.dot_dimension_numbers<[2], [1], [1], [2], [0, 0, 0, 1, 1, 2], [0], [0]>} : vector<4x8x16xbf16>, vector<4x16x8xbf16>, vector<4x8x8xf32> -> vector<4x8x8xf32>
    "tpu.trace_stop"() : () -> ()
    %69 = vector.extract_strided_slice %68 {offsets = [0, 0, 0], sizes = [1, 8, 8], strides = [1, 1, 1]} : vector<4x8x8xf32> to vector<1x8x8xf32>
    %70 = vector.shape_cast %69 : vector<1x8x8xf32> to vector<8x8xf32>
    %71 = vector.extract_strided_slice %68 {offsets = [1, 0, 0], sizes = [1, 8, 8], strides = [1, 1, 1]} : vector<4x8x8xf32> to vector<1x8x8xf32>
    %72 = vector.shape_cast %71 : vector<1x8x8xf32> to vector<8x8xf32>
    %73 = vector.extract_strided_slice %68 {offsets = [2, 0, 0], sizes = [1, 8, 8], strides = [1, 1, 1]} : vector<4x8x8xf32> to vector<1x8x8xf32>
    %74 = vector.shape_cast %73 : vector<1x8x8xf32> to vector<8x8xf32>
    %75 = vector.extract_strided_slice %68 {offsets = [3, 0, 0], sizes = [1, 8, 8], strides = [1, 1, 1]} : vector<4x8x8xf32> to vector<1x8x8xf32>
    %76 = vector.shape_cast %75 : vector<1x8x8xf32> to vector<8x8xf32>
    %77 = tpu.concatenate %70, %72, %74, %76 in 1 : vector<8x8xf32>, vector<8x8xf32>, vector<8x8xf32>, vector<8x8xf32> -> vector<8x32xf32>
    %78 = arith.addf %11, %77 : vector<8x32xf32>
    %cst_21 = arith.constant dense<0.000000e+00> : vector<8x32xf32>
    %79 = tpu.matmul %78, %6, %cst_21 {dimension_numbers = #tpu.dot_dimension_numbers<[1], [0], [0], [1], [0, 0, 1, 1], [], []>} : vector<8x32xf32>, vector<32x32xf32>, vector<8x32xf32> -> vector<8x32xf32>
    %80 = vector.extract_strided_slice %7 {offsets = [3, 0], sizes = [1, 32], strides = [1, 1]} : vector<4x32xf32> to vector<1x32xf32>
    %81 = vector.broadcast %80 : vector<1x32xf32> to vector<8x32xf32>
    %82 = arith.addf %79, %81 : vector<8x32xf32>
    %cst_22 = arith.constant 0.000000e+00 : f32
    %83 = vector.broadcast %cst_22 : f32 to vector<8x32xf32>
    %84 = arith.maximumf %82, %83 : vector<8x32xf32>
    %85 = arith.addf %78, %84 : vector<8x32xf32>
    %c0_23 = arith.constant 0 : index
    %c0_24 = arith.constant 0 : index
    %86 = vector.load %arg7[%c0_23, %c0_24] : memref<32x32xf32, #tpu.memory_space<vmem>>, vector<32x32xf32>
    %c0_25 = arith.constant 0 : index
    %c0_26 = arith.constant 0 : index
    %c0_27 = arith.constant 0 : index
    %87 = vector.load %arg8[%c0_25, %c0_26, %c0_27] : memref<2x32x32xf32, #tpu.memory_space<vmem>>, vector<2x32x32xf32>
    %c0_28 = arith.constant 0 : index
    %c0_29 = arith.constant 0 : index
    %88 = vector.load %arg9[%c0_28, %c0_29] : memref<32x32xf32, #tpu.memory_space<vmem>>, vector<32x32xf32>
    %c0_30 = arith.constant 0 : index
    %c0_31 = arith.constant 0 : index
    %89 = vector.load %arg10[%c0_30, %c0_31] : memref<4x32xf32, #tpu.memory_space<vmem>>, vector<4x32xf32>
    %cst_32 = arith.constant dense<0.000000e+00> : vector<16x32xf32>
    %90 = tpu.matmul %1, %86, %cst_32 {dimension_numbers = #tpu.dot_dimension_numbers<[1], [0], [0], [1], [0, 0, 1, 1], [], []>} : vector<16x32xf32>, vector<32x32xf32>, vector<16x32xf32> -> vector<16x32xf32>
    %91 = vector.extract_strided_slice %89 {offsets = [0, 0], sizes = [1, 32], strides = [1, 1]} : vector<4x32xf32> to vector<1x32xf32>
    %92 = vector.broadcast %91 : vector<1x32xf32> to vector<16x32xf32>
    %93 = arith.addf %90, %92 : vector<16x32xf32>
    %94 = vector.extract_strided_slice %87 {offsets = [0, 0, 0], sizes = [1, 32, 32], strides = [1, 1, 1]} : vector<2x32x32xf32> to vector<1x32x32xf32>
    %95 = vector.shape_cast %94 : vector<1x32x32xf32> to vector<32x32xf32>
    %cst_33 = arith.constant dense<0.000000e+00> : vector<8x32xf32>
    %96 = tpu.matmul %85, %95, %cst_33 {dimension_numbers = #tpu.dot_dimension_numbers<[1], [0], [0], [1], [0, 0, 1, 1], [], []>} : vector<8x32xf32>, vector<32x32xf32>, vector<8x32xf32> -> vector<8x32xf32>
    %97 = vector.extract_strided_slice %89 {offsets = [1, 0], sizes = [1, 32], strides = [1, 1]} : vector<4x32xf32> to vector<1x32xf32>
    %98 = vector.broadcast %97 : vector<1x32xf32> to vector<8x32xf32>
    %99 = arith.addf %96, %98 : vector<8x32xf32>
    %100 = vector.extract_strided_slice %87 {offsets = [1, 0, 0], sizes = [1, 32, 32], strides = [1, 1, 1]} : vector<2x32x32xf32> to vector<1x32x32xf32>
    %101 = vector.shape_cast %100 : vector<1x32x32xf32> to vector<32x32xf32>
    %cst_34 = arith.constant dense<0.000000e+00> : vector<8x32xf32>
    %102 = tpu.matmul %85, %101, %cst_34 {dimension_numbers = #tpu.dot_dimension_numbers<[1], [0], [0], [1], [0, 0, 1, 1], [], []>} : vector<8x32xf32>, vector<32x32xf32>, vector<8x32xf32> -> vector<8x32xf32>
    %103 = vector.extract_strided_slice %89 {offsets = [2, 0], sizes = [1, 32], strides = [1, 1]} : vector<4x32xf32> to vector<1x32xf32>
    %104 = vector.broadcast %103 : vector<1x32xf32> to vector<8x32xf32>
    %105 = arith.addf %102, %104 : vector<8x32xf32>
    %106 = vector.extract_strided_slice %93 {offsets = [0, 0], sizes = [16, 8], strides = [1, 1]} : vector<16x32xf32> to vector<16x8xf32>
    %107 = vector.extract_strided_slice %93 {offsets = [0, 8], sizes = [16, 8], strides = [1, 1]} : vector<16x32xf32> to vector<16x8xf32>
    %108 = vector.extract_strided_slice %93 {offsets = [0, 16], sizes = [16, 8], strides = [1, 1]} : vector<16x32xf32> to vector<16x8xf32>
    %109 = vector.extract_strided_slice %93 {offsets = [0, 24], sizes = [16, 8], strides = [1, 1]} : vector<16x32xf32> to vector<16x8xf32>
    %110 = vector.shape_cast %106 : vector<16x8xf32> to vector<1x16x8xf32>
    %111 = vector.shape_cast %107 : vector<16x8xf32> to vector<1x16x8xf32>
    %112 = vector.shape_cast %108 : vector<16x8xf32> to vector<1x16x8xf32>
    %113 = vector.shape_cast %109 : vector<16x8xf32> to vector<1x16x8xf32>
    %114 = tpu.concatenate %110, %111, %112, %113 in 0 : vector<1x16x8xf32>, vector<1x16x8xf32>, vector<1x16x8xf32>, vector<1x16x8xf32> -> vector<4x16x8xf32>
    %115 = arith.truncf %114 : vector<4x16x8xf32> to vector<4x16x8xbf16>
    %116 = vector.extract_strided_slice %99 {offsets = [0, 0], sizes = [8, 8], strides = [1, 1]} : vector<8x32xf32> to vector<8x8xf32>
    %117 = vector.extract_strided_slice %99 {offsets = [0, 8], sizes = [8, 8], strides = [1, 1]} : vector<8x32xf32> to vector<8x8xf32>
    %118 = vector.extract_strided_slice %99 {offsets = [0, 16], sizes = [8, 8], strides = [1, 1]} : vector<8x32xf32> to vector<8x8xf32>
    %119 = vector.extract_strided_slice %99 {offsets = [0, 24], sizes = [8, 8], strides = [1, 1]} : vector<8x32xf32> to vector<8x8xf32>
    %120 = vector.shape_cast %116 : vector<8x8xf32> to vector<1x8x8xf32>
    %121 = vector.shape_cast %117 : vector<8x8xf32> to vector<1x8x8xf32>
    %122 = vector.shape_cast %118 : vector<8x8xf32> to vector<1x8x8xf32>
    %123 = vector.shape_cast %119 : vector<8x8xf32> to vector<1x8x8xf32>
    %124 = tpu.concatenate %120, %121, %122, %123 in 0 : vector<1x8x8xf32>, vector<1x8x8xf32>, vector<1x8x8xf32>, vector<1x8x8xf32> -> vector<4x8x8xf32>
    %125 = arith.truncf %124 : vector<4x8x8xf32> to vector<4x8x8xbf16>
    %126 = vector.extract_strided_slice %105 {offsets = [0, 0], sizes = [8, 8], strides = [1, 1]} : vector<8x32xf32> to vector<8x8xf32>
    %127 = vector.extract_strided_slice %105 {offsets = [0, 8], sizes = [8, 8], strides = [1, 1]} : vector<8x32xf32> to vector<8x8xf32>
    %128 = vector.extract_strided_slice %105 {offsets = [0, 16], sizes = [8, 8], strides = [1, 1]} : vector<8x32xf32> to vector<8x8xf32>
    %129 = vector.extract_strided_slice %105 {offsets = [0, 24], sizes = [8, 8], strides = [1, 1]} : vector<8x32xf32> to vector<8x8xf32>
    %130 = vector.shape_cast %126 : vector<8x8xf32> to vector<1x8x8xf32>
    %131 = vector.shape_cast %127 : vector<8x8xf32> to vector<1x8x8xf32>
    %132 = vector.shape_cast %128 : vector<8x8xf32> to vector<1x8x8xf32>
    %133 = vector.shape_cast %129 : vector<8x8xf32> to vector<1x8x8xf32>
    %134 = tpu.concatenate %130, %131, %132, %133 in 0 : vector<1x8x8xf32>, vector<1x8x8xf32>, vector<1x8x8xf32>, vector<1x8x8xf32> -> vector<4x8x8xf32>
    %135 = arith.truncf %134 : vector<4x8x8xf32> to vector<4x8x8xbf16>
    "tpu.trace_start"() <{level = 10 : i32, message = "hqd,hkd->hqk"}> : () -> ()
    %cst_35 = arith.constant dense<0.000000e+00> : vector<4x16x8xf32>
    %136 = tpu.matmul %115, %125, %cst_35 {dimension_numbers = #tpu.dot_dimension_numbers<[2], [2], [1], [1], [0, 0, 0, 1, 1, 1], [0], [0]>} : vector<4x16x8xbf16>, vector<4x8x8xbf16>, vector<4x16x8xf32> -> vector<4x16x8xf32>
    "tpu.trace_stop"() : () -> ()
    %cst_36 = arith.constant 0.176776692 : f32
    %137 = vector.broadcast %cst_36 : f32 to vector<4x16x8xf32>
    %138 = arith.mulf %136, %137 : vector<4x16x8xf32>
    %cst_37 = arith.constant dense<0xFF800000> : vector<4x16xf32>
    %139 = vector.multi_reduction <maximumf>, %138, %cst_37 [2] : vector<4x16x8xf32> to vector<4x16xf32>
    %140 = vector.shape_cast %139 : vector<4x16xf32> to vector<4x16x1xf32>
    %141 = vector.broadcast %140 : vector<4x16x1xf32> to vector<4x16x8xf32>
    %142 = arith.subf %138, %141 : vector<4x16x8xf32>
    %143 = math.exp %142 : vector<4x16x8xf32>
    %cst_38 = arith.constant dense<0.000000e+00> : vector<4x16xf32>
    %144 = vector.multi_reduction <add>, %143, %cst_38 [2] : vector<4x16x8xf32> to vector<4x16xf32>
    %145 = vector.shape_cast %144 : vector<4x16xf32> to vector<4x16x1xf32>
    %146 = tpu.reciprocal %145 {approx = true} : vector<4x16x1xf32> -> vector<4x16x1xf32>
    %147 = vector.broadcast %146 : vector<4x16x1xf32> to vector<4x16x8xf32>
    %148 = arith.mulf %143, %147 : vector<4x16x8xf32>
    %149 = arith.truncf %148 : vector<4x16x8xf32> to vector<4x16x8xbf16>
    "tpu.trace_start"() <{level = 10 : i32, message = "hqk,hkd->hqd"}> : () -> ()
    %cst_39 = arith.constant dense<0.000000e+00> : vector<4x16x8xf32>
    %150 = tpu.matmul %149, %135, %cst_39 {dimension_numbers = #tpu.dot_dimension_numbers<[2], [1], [1], [2], [0, 0, 0, 1, 1, 2], [0], [0]>} : vector<4x16x8xbf16>, vector<4x8x8xbf16>, vector<4x16x8xf32> -> vector<4x16x8xf32>
    "tpu.trace_stop"() : () -> ()
    %151 = vector.extract_strided_slice %150 {offsets = [0, 0, 0], sizes = [1, 16, 8], strides = [1, 1, 1]} : vector<4x16x8xf32> to vector<1x16x8xf32>
    %152 = vector.shape_cast %151 : vector<1x16x8xf32> to vector<16x8xf32>
    %153 = vector.extract_strided_slice %150 {offsets = [1, 0, 0], sizes = [1, 16, 8], strides = [1, 1, 1]} : vector<4x16x8xf32> to vector<1x16x8xf32>
    %154 = vector.shape_cast %153 : vector<1x16x8xf32> to vector<16x8xf32>
    %155 = vector.extract_strided_slice %150 {offsets = [2, 0, 0], sizes = [1, 16, 8], strides = [1, 1, 1]} : vector<4x16x8xf32> to vector<1x16x8xf32>
    %156 = vector.shape_cast %155 : vector<1x16x8xf32> to vector<16x8xf32>
    %157 = vector.extract_strided_slice %150 {offsets = [3, 0, 0], sizes = [1, 16, 8], strides = [1, 1, 1]} : vector<4x16x8xf32> to vector<1x16x8xf32>
    %158 = vector.shape_cast %157 : vector<1x16x8xf32> to vector<16x8xf32>
    %159 = tpu.concatenate %152, %154, %156, %158 in 1 : vector<16x8xf32>, vector<16x8xf32>, vector<16x8xf32>, vector<16x8xf32> -> vector<16x32xf32>
    %160 = arith.addf %93, %159 : vector<16x32xf32>
    %cst_40 = arith.constant dense<0.000000e+00> : vector<16x32xf32>
    %161 = tpu.matmul %160, %88, %cst_40 {dimension_numbers = #tpu.dot_dimension_numbers<[1], [0], [0], [1], [0, 0, 1, 1], [], []>} : vector<16x32xf32>, vector<32x32xf32>, vector<16x32xf32> -> vector<16x32xf32>
    %162 = vector.extract_strided_slice %89 {offsets = [3, 0], sizes = [1, 32], strides = [1, 1]} : vector<4x32xf32> to vector<1x32xf32>
    %163 = vector.broadcast %162 : vector<1x32xf32> to vector<16x32xf32>
    %164 = arith.addf %161, %163 : vector<16x32xf32>
    %cst_41 = arith.constant 0.000000e+00 : f32
    %165 = vector.broadcast %cst_41 : f32 to vector<16x32xf32>
    %166 = arith.maximumf %164, %165 : vector<16x32xf32>
    %167 = arith.addf %160, %166 : vector<16x32xf32>
    %c0_42 = arith.constant 0 : index
    %c0_43 = arith.constant 0 : index
    %c0_44 = arith.constant 0 : index
    %168 = vector.load %arg11[%c0_42, %c0_43, %c0_44] : memref<1x16x32xf32, #tpu.memory_space<vmem>>, vector<1x16x32xf32>
    %169 = vector.shape_cast %168 : vector<1x16x32xf32> to vector<16x32xf32>
    %170 = vector.shape_cast %167 : vector<16x32xf32> to vector<1x16x32xf32>
    tpu.vector_store %arg11[%c0_42, %c0_43, %c0_44], %170 {strides = array<i32>} : memref<1x16x32xf32, #tpu.memory_space<vmem>>, vector<1x16x32xf32>,
    return
  }
  func.func @transform_0(%arg0: i32) -> (i32, i32, i32) {
    %c0_i32 = arith.constant 0 : i32
    %c0_i32_0 = arith.constant 0 : i32
    %c0_i32_1 = arith.constant 0 : i32
    return %arg0, %c0_i32, %c0_i32_0 : i32, i32, i32
  }
  func.func @transform_1(%arg0: i32) -> (i32, i32, i32) {
    %c0_i32 = arith.constant 0 : i32
    %c0_i32_0 = arith.constant 0 : i32
    %c0_i32_1 = arith.constant 0 : i32
    %c0_i32_2 = arith.constant 0 : i32
    return %c0_i32, %c0_i32_0, %c0_i32_1 : i32, i32, i32
  }
  func.func @transform_2(%arg0: i32) -> (i32, i32) {
    %c0_i32 = arith.constant 0 : i32
    %c0_i32_0 = arith.constant 0 : i32
    %c0_i32_1 = arith.constant 0 : i32
    return %c0_i32, %c0_i32_0 : i32, i32
  }
  func.func @transform_3(%arg0: i32) -> (i32, i32, i32) {
    %c0_i32 = arith.constant 0 : i32
    %c0_i32_0 = arith.constant 0 : i32
    %c0_i32_1 = arith.constant 0 : i32
    %c0_i32_2 = arith.constant 0 : i32
    return %c0_i32, %c0_i32_0, %c0_i32_1 : i32, i32, i32
  }
  func.func @transform_4(%arg0: i32) -> (i32, i32) {
    %c0_i32 = arith.constant 0 : i32
    %c0_i32_0 = arith.constant 0 : i32
    %c0_i32_1 = arith.constant 0 : i32
    return %c0_i32, %c0_i32_0 : i32, i32
  }
  func.func @transform_5(%arg0: i32) -> (i32, i32) {
    %c0_i32 = arith.constant 0 : i32
    %c0_i32_0 = arith.constant 0 : i32
    %c0_i32_1 = arith.constant 0 : i32
    return %c0_i32, %c0_i32_0 : i32, i32
  }
  func.func @transform_6(%arg0: i32) -> (i32, i32) {
    %c0_i32 = arith.constant 0 : i32
    %c0_i32_0 = arith.constant 0 : i32
    %c0_i32_1 = arith.constant 0 : i32
    return %c0_i32, %c0_i32_0 : i32, i32
  }
  func.func @transform_7(%arg0: i32) -> (i32, i32, i32) {
    %c0_i32 = arith.constant 0 : i32
    %c0_i32_0 = arith.constant 0 : i32
    %c0_i32_1 = arith.constant 0 : i32
    %c0_i32_2 = arith.constant 0 : i32
    return %c0_i32, %c0_i32_0, %c0_i32_1 : i32, i32, i32
  }
  func.func @transform_8(%arg0: i32) -> (i32, i32) {
    %c0_i32 = arith.constant 0 : i32
    %c0_i32_0 = arith.constant 0 : i32
    %c0_i32_1 = arith.constant 0 : i32
    return %c0_i32, %c0_i32_0 : i32, i32
  }
  func.func @transform_9(%arg0: i32) -> (i32, i32) {
    %c0_i32 = arith.constant 0 : i32
    %c0_i32_0 = arith.constant 0 : i32
    %c0_i32_1 = arith.constant 0 : i32
    return %c0_i32, %c0_i32_0 : i32, i32
  }
  func.func @transform_10(%arg0: i32) -> (i32, i32, i32) {
    %c0_i32 = arith.constant 0 : i32
    %c0_i32_0 = arith.constant 0 : i32
    %c0_i32_1 = arith.constant 0 : i32
    return %arg0, %c0_i32, %c0_i32_0 : i32, i32, i32
  }
}

</mosaic_0001>

<llo_original>
// kernel: tpu_custom_call.1
$region0: #{tpu_custom_call.1}
  #allocation0 [shape = 'u32[]', space=smem, size = 0x4, offset = 0x4, fixed_abs, tag = 'smem constant byte address 0x4 - core index']
  #allocation1 [shape = 'u32[144,128]{1,0:T(1,128)}', space=vmem, size = 0x12000, scoped, tag = 'internal scratch']
  %s0 = inlined_call_operand.hbm [shape: f32[2,16,32], index: 0, kind: input, shape index: {}]
  %s1 = inlined_call_operand.hbm [shape: f32[1,8,32], index: 1, kind: input, shape index: {}]
  %s2 = inlined_call_operand.hbm [shape: f32[32,32], index: 2, kind: input, shape index: {}]
  %s3 = inlined_call_operand.hbm [shape: f32[2,32,32], index: 3, kind: input, shape index: {}]
  %s4 = inlined_call_operand.hbm [shape: f32[32,32], index: 4, kind: input, shape index: {}]
  %s5 = inlined_call_operand.vmem [shape: f32[4,32], index: 5, kind: input, shape index: {}]
  %s6 = inlined_call_operand.hbm [shape: f32[32,32], index: 6, kind: input, shape index: {}]
  %s7 = inlined_call_operand.hbm [shape: f32[2,32,32], index: 7, kind: input, shape index: {}]
  %s8 = inlined_call_operand.hbm [shape: f32[32,32], index: 8, kind: input, shape index: {}]
  %s9 = inlined_call_operand.vmem [shape: f32[4,32], index: 9, kind: input, shape index: {}]
  %s10 = inlined_call_operand.hbm [shape: f32[2,16,32], index: 10, kind: output, shape index: {}]
  %s11 = sld [smem:[#allocation0]]
  $region105: #{tpu_custom_call.1} parent=0
    _
  %s13 = ssub.s32 1, %s11
  %s14 = scalar_select 0, %s13, %s11
  $region1: #{tpu_custom_call.1} parent=0
    #allocation2 [shape = 'u8[16384]{0}', space=vmem, size = 0x4000, scoped, tag = 'input window, operand 0']
    #allocation3 [shape = 's32[2]{0}', space=sflag, size = 0x8, scoped, tag = 'scoped memory for tpu_custom_call.1']
    #allocation4 [shape = 's32[2]{0}', space=sflag, size = 0x8, scoped, tag = 'scoped memory for tpu_custom_call.1']
    #allocation5 [shape = 'u8[4096]{0}', space=vmem, size = 0x1000, scoped, tag = 'input window, operand 1, single buffered']
    #allocation6 [shape = 's32[1]{0}', space=sflag, size = 0x4, scoped, tag = 'scoped memory for tpu_custom_call.1']
    #allocation7 [shape = 'u8[16384]{0}', space=vmem, size = 0x4000, scoped, tag = 'input window, operand 2, single buffered']
    #allocation8 [shape = 'u8[32768]{0}', space=vmem, size = 0x8000, scoped, tag = 'input window, operand 3, single buffered']
    #allocation9 [shape = 's32[1]{0}', space=sflag, size = 0x4, scoped, tag = 'scoped memory for tpu_custom_call.1']
    #allocation10 [shape = 'u8[16384]{0}', space=vmem, size = 0x4000, scoped, tag = 'input window, operand 4, single buffered']
    #allocation11 [shape = 'u8[16384]{0}', space=vmem, size = 0x4000, scoped, tag = 'input window, operand 6, single buffered']
    #allocation12 [shape = 's32[1]{0}', space=sflag, size = 0x4, scoped, tag = 'scoped memory for tpu_custom_call.1']
    #allocation13 [shape = 'u8[32768]{0}', space=vmem, size = 0x8000, scoped, tag = 'input window, operand 7, single buffered']
    #allocation14 [shape = 'u8[16384]{0}', space=vmem, size = 0x4000, scoped, tag = 'input window, operand 8, single buffered']
    #allocation15 [shape = 's32[1]{0}', space=sflag, size = 0x4, scoped, tag = 'scoped memory for tpu_custom_call.1']
    #allocation16 [shape = 'u8[16384]{0}', space=vmem, size = 0x4000, scoped, tag = 'output window, operand 0']
    %15 = vsyncpa [#allocation3], 0
    %s16 = scalar_lea.sflag [#allocation3], 1
    %17 = vsyncpa %s16, 0
    %18 = vsyncpa [#allocation6], 0
    %19 = vsyncpa [#allocation9], 0
    %20 = vsyncpa [#allocation12], 0
    %21 = vsyncpa [#allocation15], 0
    %22 = vsyncpa [#allocation4], 0
    %s23 = scalar_lea.sflag [#allocation4], 1
    %24 = vsyncpa %s23, 0
    loop: start=0, step=1, limit=4
    $region2: #{tpu_custom_call.1} parent=1 // loop_pre_header
      _
    $region3: #{tpu_custom_call.1} parent=1 // loop_header
      %s26 = sphi 0, %s30
      %p27 = scmp.ge.s32.totalorder %s26, 4
      %s36 = sphi 0, %s38
      %s39 = sphi 0, %s36
      %s40 = sphi 0, %s39
      %s56 = sphi 0, %s40
      %s60 = sphi 0, %s60
      %s62 = sphi 0, %s60
      %s63 = sphi 0, %s62
      %s77 = sphi 0, %s63
      %s81 = sphi 0, %s81
      %s83 = sphi 0, %s81
      %s84 = sphi 0, %s83
      %s98 = sphi 0, %s84
      %s102 = sphi 0, %s102
      %s104 = sphi 0, %s102
      %s105 = sphi 0, %s104
      %s119 = sphi 0, %s105
      %s123 = sphi 0, %s123
      %s125 = sphi 0, %s123
      %s126 = sphi 0, %s125
      %s140 = sphi 0, %s126
      %s144 = sphi 0, %s144
      %s146 = sphi 0, %s144
      %s147 = sphi 0, %s146
      %s161 = sphi 0, %s147
      %s165 = sphi 0, %s165
      %s167 = sphi 0, %s165
      %s168 = sphi 0, %s167
      %s182 = sphi 0, %s168
      %s186 = sphi 0, %s186
      %s188 = sphi 0, %s186
      %s189 = sphi 0, %s188
      %s203 = sphi 0, %s189
      %s207 = sphi 0, %s207
      %s209 = sphi 0, %s207
      %s210 = sphi 0, %s209
      %s224 = sphi 0, %s210
      %s228 = sphi 0, %s228
      %s230 = sphi 0, %s228
      %s231 = sphi 0, %s230
      %s245 = sphi 0, %s231
      %s251 = sphi 0, %s253
      %s254 = sphi 0, %s251
      %s255 = sphi 0, %s254
      %s271 = sphi 0, %s255
    $region4: #{tpu_custom_call.1} parent=1 // loop_header_branch
      %29 = sbr.rel (%p27) target = $region8
    $region5: #{tpu_custom_call.1} parent=1 // loop_body
      %s31 = ssub.s32 %s26, 1
      %s32 = ssub.s32 %s26, 2
      %s33 = sadd.s32 %s26, 1
      %s34 = ssub.s32 %s26, %s33
      %p35 = scmp.eq.s32.totalorder %s34, 0
      %s37 = sadd.s32 %s36, 1
      %s38 = scalar_select %p35, %s36, %s37
      %p41 = pneg %p35
      %p42 = scmp.eq.s32.totalorder %s26, 1
      %p43 = por %p41, %p42
      %p44 = scmp.ne.s32.totalorder %s36, %s39
      %p45 = scmp.eq.s32.totalorder %s26, 0
      %p46 = por %p44, %p45
      %p47 = scmp.ne.s32.totalorder %s36, %s39
      %p48 = scmp.eq.s32.totalorder %s31, 1
      %p49 = por %p47, %p48
      %p50 = scmp.ne.s32.totalorder %s39, %s40
      %p51 = scmp.eq.s32.totalorder %s31, 0
      %p52 = por %p50, %p51
      %p53 = scmp.ne.s32.totalorder %s39, %s40
      %p54 = scmp.eq.s32.totalorder %s32, 1
      %p55 = por %p53, %p54
      %p57 = scmp.ne.s32.totalorder %s40, %s56
      %p58 = scmp.eq.s32.totalorder %s32, 0
      %p59 = por %p57, %p58
      %s61 = sadd.s32 %s60, 1
      %p64 = scmp.eq.s32.totalorder %s26, 1
      %p65 = scmp.ne.s32.totalorder %s60, %s62
      %p66 = scmp.eq.s32.totalorder %s26, 0
      %p67 = por %p65, %p66
      %p68 = scmp.ne.s32.totalorder %s60, %s62
      %p69 = scmp.eq.s32.totalorder %s31, 1
      %p70 = por %p68, %p69
      %p71 = scmp.ne.s32.totalorder %s62, %s63
      %p72 = scmp.eq.s32.totalorder %s31, 0
      %p73 = por %p71, %p72
      %p74 = scmp.ne.s32.totalorder %s62, %s63
      %p75 = scmp.eq.s32.totalorder %s32, 1
      %p76 = por %p74, %p75
      %p78 = scmp.ne.s32.totalorder %s63, %s77
      %p79 = scmp.eq.s32.totalorder %s32, 0
      %p80 = por %p78, %p79
      %s82 = sadd.s32 %s81, 1
      %p85 = scmp.eq.s32.totalorder %s26, 1
      %p86 = scmp.ne.s32.totalorder %s81, %s83
      %p87 = scmp.eq.s32.totalorder %s26, 0
      %p88 = por %p86, %p87
      %p89 = scmp.ne.s32.totalorder %s81, %s83
      %p90 = scmp.eq.s32.totalorder %s31, 1
      %p91 = por %p89, %p90
      %p92 = scmp.ne.s32.totalorder %s83, %s84
      %p93 = scmp.eq.s32.totalorder %s31, 0
      %p94 = por %p92, %p93
      %p95 = scmp.ne.s32.totalorder %s83, %s84
      %p96 = scmp.eq.s32.totalorder %s32, 1
      %p97 = por %p95, %p96
      %p99 = scmp.ne.s32.totalorder %s84, %s98
      %p100 = scmp.eq.s32.totalorder %s32, 0
      %p101 = por %p99, %p100
      %s103 = sadd.s32 %s102, 1
      %p106 = scmp.eq.s32.totalorder %s26, 1
      %p107 = scmp.ne.s32.totalorder %s102, %s104
      %p108 = scmp.eq.s32.totalorder %s26, 0
      %p109 = por %p107, %p108
      %p110 = scmp.ne.s32.totalorder %s102, %s104
      %p111 = scmp.eq.s32.totalorder %s31, 1
      %p112 = por %p110, %p111
      %p113 = scmp.ne.s32.totalorder %s104, %s105
      %p114 = scmp.eq.s32.totalorder %s31, 0
      %p115 = por %p113, %p114
      %p116 = scmp.ne.s32.totalorder %s104, %s105
      %p117 = scmp.eq.s32.totalorder %s32, 1
      %p118 = por %p116, %p117
      %p120 = scmp.ne.s32.totalorder %s105, %s119
      %p121 = scmp.eq.s32.totalorder %s32, 0
      %p122 = por %p120, %p121
      %s124 = sadd.s32 %s123, 1
      %p127 = scmp.eq.s32.totalorder %s26, 1
      %p128 = scmp.ne.s32.totalorder %s123, %s125
      %p129 = scmp.eq.s32.totalorder %s26, 0
      %p130 = por %p128, %p129
      %p131 = scmp.ne.s32.totalorder %s123, %s125
      %p132 = scmp.eq.s32.totalorder %s31, 1
      %p133 = por %p131, %p132
      %p134 = scmp.ne.s32.totalorder %s125, %s126
      %p135 = scmp.eq.s32.totalorder %s31, 0
      %p136 = por %p134, %p135
      %p137 = scmp.ne.s32.totalorder %s125, %s126
      %p138 = scmp.eq.s32.totalorder %s32, 1
      %p139 = por %p137, %p138
      %p141 = scmp.ne.s32.totalorder %s126, %s140
      %p142 = scmp.eq.s32.totalorder %s32, 0
      %p143 = por %p141, %p142
      %s145 = sadd.s32 %s144, 1
      %p148 = scmp.eq.s32.totalorder %s26, 1
      %p149 = scmp.ne.s32.totalorder %s144, %s146
      %p150 = scmp.eq.s32.totalorder %s26, 0
      %p151 = por %p149, %p150
      %p152 = scmp.ne.s32.totalorder %s144, %s146
      %p153 = scmp.eq.s32.totalorder %s31, 1
      %p154 = por %p152, %p153
      %p155 = scmp.ne.s32.totalorder %s146, %s147
      %p156 = scmp.eq.s32.totalorder %s31, 0
      %p157 = por %p155, %p156
      %p158 = scmp.ne.s32.totalorder %s146, %s147
      %p159 = scmp.eq.s32.totalorder %s32, 1
      %p160 = por %p158, %p159
      %p162 = scmp.ne.s32.totalorder %s147, %s161
      %p163 = scmp.eq.s32.totalorder %s32, 0
      %p164 = por %p162, %p163
      %s166 = sadd.s32 %s165, 1
      %p169 = scmp.eq.s32.totalorder %s26, 1
      %p170 = scmp.ne.s32.totalorder %s165, %s167
      %p171 = scmp.eq.s32.totalorder %s26, 0
      %p172 = por %p170, %p171
      %p173 = scmp.ne.s32.totalorder %s165, %s167
      %p174 = scmp.eq.s32.totalorder %s31, 1
      %p175 = por %p173, %p174
      %p176 = scmp.ne.s32.totalorder %s167, %s168
      %p177 = scmp.eq.s32.totalorder %s31, 0
      %p178 = por %p176, %p177
      %p179 = scmp.ne.s32.totalorder %s167, %s168
      %p180 = scmp.eq.s32.totalorder %s32, 1
      %p181 = por %p179, %p180
      %p183 = scmp.ne.s32.totalorder %s168, %s182
      %p184 = scmp.eq.s32.totalorder %s32, 0
      %p185 = por %p183, %p184
      %s187 = sadd.s32 %s186, 1
      %p190 = scmp.eq.s32.totalorder %s26, 1
      %p191 = scmp.ne.s32.totalorder %s186, %s188
      %p192 = scmp.eq.s32.totalorder %s26, 0
      %p193 = por %p191, %p192
      %p194 = scmp.ne.s32.totalorder %s186, %s188
      %p195 = scmp.eq.s32.totalorder %s31, 1
      %p196 = por %p194, %p195
      %p197 = scmp.ne.s32.totalorder %s188, %s189
      %p198 = scmp.eq.s32.totalorder %s31, 0
      %p199 = por %p197, %p198
      %p200 = scmp.ne.s32.totalorder %s188, %s189
      %p201 = scmp.eq.s32.totalorder %s32, 1
      %p202 = por %p200, %p201
      %p204 = scmp.ne.s32.totalorder %s189, %s203
      %p205 = scmp.eq.s32.totalorder %s32, 0
      %p206 = por %p204, %p205
      %s208 = sadd.s32 %s207, 1
      %p211 = scmp.eq.s32.totalorder %s26, 1
      %p212 = scmp.ne.s32.totalorder %s207, %s209
      %p213 = scmp.eq.s32.totalorder %s26, 0
      %p214 = por %p212, %p213
      %p215 = scmp.ne.s32.totalorder %s207, %s209
      %p216 = scmp.eq.s32.totalorder %s31, 1
      %p217 = por %p215, %p216
      %p218 = scmp.ne.s32.totalorder %s209, %s210
      %p219 = scmp.eq.s32.totalorder %s31, 0
      %p220 = por %p218, %p219
      %p221 = scmp.ne.s32.totalorder %s209, %s210
      %p222 = scmp.eq.s32.totalorder %s32, 1
      %p223 = por %p221, %p222
      %p225 = scmp.ne.s32.totalorder %s210, %s224
      %p226 = scmp.eq.s32.totalorder %s32, 0
      %p227 = por %p225, %p226
      %s229 = sadd.s32 %s228, 1
      %p232 = scmp.eq.s32.totalorder %s26, 1
      %p233 = scmp.ne.s32.totalorder %s228, %s230
      %p234 = scmp.eq.s32.totalorder %s26, 0
      %p235 = por %p233, %p234
      %p236 = scmp.ne.s32.totalorder %s228, %s230
      %p237 = scmp.eq.s32.totalorder %s31, 1
      %p238 = por %p236, %p237
      %p239 = scmp.ne.s32.totalorder %s230, %s231
      %p240 = scmp.eq.s32.totalorder %s31, 0
      %p241 = por %p239, %p240
      %p242 = scmp.ne.s32.totalorder %s230, %s231
      %p243 = scmp.eq.s32.totalorder %s32, 1
      %p244 = por %p242, %p243
      %p246 = scmp.ne.s32.totalorder %s231, %s245
      %p247 = scmp.eq.s32.totalorder %s32, 0
      %p248 = por %p246, %p247
      %s249 = ssub.s32 %s26, %s33
      %p250 = scmp.eq.s32.totalorder %s249, 0
      %s252 = sadd.s32 %s251, 1
      %s253 = scalar_select %p250, %s251, %s252
      %p256 = pneg %p250
      %p257 = scmp.eq.s32.totalorder %s26, 1
      %p258 = por %p256, %p257
      %p259 = scmp.ne.s32.totalorder %s251, %s254
      %p260 = scmp.eq.s32.totalorder %s26, 0
      %p261 = por %p259, %p260
      %p262 = scmp.ne.s32.totalorder %s251, %s254
      %p263 = scmp.eq.s32.totalorder %s31, 1
      %p264 = por %p262, %p263
      %p265 = scmp.ne.s32.totalorder %s254, %s255
      %p266 = scmp.eq.s32.totalorder %s31, 0
      %p267 = por %p265, %p266
      %p268 = scmp.ne.s32.totalorder %s254, %s255
      %p269 = scmp.eq.s32.totalorder %s32, 1
      %p270 = por %p268, %p269
      %p272 = scmp.ne.s32.totalorder %s255, %s271
      %p273 = scmp.eq.s32.totalorder %s32, 0
      %p274 = por %p272, %p273
      %p275 = scmp.le.s32.totalorder 1, %s26
      %p276 = scmp.lt.s32.totalorder %s26, 3
      %p277 = pnand %p275, %p276
      %p278 = pneg %p277
      // Predicated region
      $region9: #{tpu_custom_call.1} parent=5 // pred_check
        _
      $region10: #{tpu_custom_call.1} parent=5 // pred_check_branch
        %280 = sbr.rel (%p277) target = $region12
      $region11: #{tpu_custom_call.1} parent=5 // pred_region
        %s281 = ssub.s32 %s26, 1
        // Predicated region
        $region13: #{tpu_custom_call.1} parent=11 // pred_check
          %p282 = pneg %p73
        $region14: #{tpu_custom_call.1} parent=11 // pred_check_branch
          %284 = sbr.rel (%p282) target = $region16
        $region15: #{tpu_custom_call.1} parent=11 // pred_region
          %s286 = ssub.s32 128, 128
          %287 = vsyncadd [#allocation6], %s286
          %s289 = sshll.u32 [#allocation5], 4
          %s290 = int_to_ptr.vmem [resolvable:$true] %s289
          %292 = dma.hbm_to_vmem [thread:$0]  %s1, 128, %s290, [#allocation6]
        $region16: #{tpu_custom_call.1} parent=11 // pred_fallthru
          _
        // Predicated region
        $region17: #{tpu_custom_call.1} parent=11 // pred_check
          %p293 = pneg %p94
        $region18: #{tpu_custom_call.1} parent=11 // pred_check_branch
          %295 = sbr.rel (%p293) target = $region20
        $region19: #{tpu_custom_call.1} parent=11 // pred_region
          %s297 = ssub.s32 512, 512
          %298 = vsyncadd [#allocation6], %s297
          %s299 = sshll.u32 [#allocation7], 4
          %s300 = int_to_ptr.vmem [resolvable:$true] %s299
          %305 = dma.hbm_to_vmem [thread:$0]  %s2, 512, %s300, [#allocation6], 128, 128, 8
        $region20: #{tpu_custom_call.1} parent=11 // pred_fallthru
          _
        // Predicated region
        $region21: #{tpu_custom_call.1} parent=11 // pred_check
          %p306 = pneg %p115
        $region22: #{tpu_custom_call.1} parent=11 // pred_check_branch
          %308 = sbr.rel (%p306) target = $region24
        $region23: #{tpu_custom_call.1} parent=11 // pred_region
          %s310 = ssub.s32 1024, 1024
          %311 = vsyncadd [#allocation9], %s310
          %s312 = sshll.u32 [#allocation8], 4
          %s313 = int_to_ptr.vmem [resolvable:$true] %s312
          %318 = dma.hbm_to_vmem [thread:$0]  %s3, 1024, %s313, [#allocation9], 128, 128, 8
        $region24: #{tpu_custom_call.1} parent=11 // pred_fallthru
          _
        // Predicated region
        $region25: #{tpu_custom_call.1} parent=11 // pred_check
          %p319 = pneg %p136
        $region26: #{tpu_custom_call.1} parent=11 // pred_check_branch
          %321 = sbr.rel (%p319) target = $region28
        $region27: #{tpu_custom_call.1} parent=11 // pred_region
          %s323 = ssub.s32 512, 512
          %324 = vsyncadd [#allocation9], %s323
          %s325 = sshll.u32 [#allocation10], 4
          %s326 = int_to_ptr.vmem [resolvable:$true] %s325
          %331 = dma.hbm_to_vmem [thread:$0]  %s4, 512, %s326, [#allocation9], 128, 128, 8
        $region28: #{tpu_custom_call.1} parent=11 // pred_fallthru
          _
        // Predicated region
        $region29: #{tpu_custom_call.1} parent=11 // pred_check
          %p332 = pneg %p157
        $region30: #{tpu_custom_call.1} parent=11 // pred_check_branch
          %334 = sbr.rel (%p332) target = $region32
        $region31: #{tpu_custom_call.1} parent=11 // pred_region
          _
        $region32: #{tpu_custom_call.1} parent=11 // pred_fallthru
          _
        // Predicated region
        $region33: #{tpu_custom_call.1} parent=11 // pred_check
          %p335 = pneg %p178
        $region34: #{tpu_custom_call.1} parent=11 // pred_check_branch
          %337 = sbr.rel (%p335) target = $region36
        $region35: #{tpu_custom_call.1} parent=11 // pred_region
          %s339 = ssub.s32 512, 512
          %340 = vsyncadd [#allocation12], %s339
          %s341 = sshll.u32 [#allocation11], 4
          %s342 = int_to_ptr.vmem [resolvable:$true] %s341
          %347 = dma.hbm_to_vmem [thread:$0]  %s6, 512, %s342, [#allocation12], 128, 128, 8
        $region36: #{tpu_custom_call.1} parent=11 // pred_fallthru
          _
        // Predicated region
        $region37: #{tpu_custom_call.1} parent=11 // pred_check
          %p348 = pneg %p199
        $region38: #{tpu_custom_call.1} parent=11 // pred_check_branch
          %350 = sbr.rel (%p348) target = $region40
        $region39: #{tpu_custom_call.1} parent=11 // pred_region
          %s352 = ssub.s32 1024, 1024
          %353 = vsyncadd [#allocation12], %s352
          %s354 = sshll.u32 [#allocation13], 4
          %s355 = int_to_ptr.vmem [resolvable:$true] %s354
          %360 = dma.hbm_to_vmem [thread:$0]  %s7, 1024, %s355, [#allocation12], 128, 128, 8
        $region40: #{tpu_custom_call.1} parent=11 // pred_fallthru
          _
        // Predicated region
        $region41: #{tpu_custom_call.1} parent=11 // pred_check
          %p361 = pneg %p220
        $region42: #{tpu_custom_call.1} parent=11 // pred_check_branch
          %363 = sbr.rel (%p361) target = $region44
        $region43: #{tpu_custom_call.1} parent=11 // pred_region
          %s365 = ssub.s32 512, 512
          %366 = vsyncadd [#allocation15], %s365
          %s367 = sshll.u32 [#allocation14], 4
          %s368 = int_to_ptr.vmem [resolvable:$true] %s367
          %373 = dma.hbm_to_vmem [thread:$0]  %s8, 512, %s368, [#allocation15], 128, 128, 8
        $region44: #{tpu_custom_call.1} parent=11 // pred_fallthru
          _
        // Predicated region
        $region45: #{tpu_custom_call.1} parent=11 // pred_check
          %p374 = pneg %p241
        $region46: #{tpu_custom_call.1} parent=11 // pred_check_branch
          %376 = sbr.rel (%p374) target = $region48
        $region47: #{tpu_custom_call.1} parent=11 // pred_region
          _
        $region48: #{tpu_custom_call.1} parent=11 // pred_fallthru
          _
      $region12: #{tpu_custom_call.1} parent=5 // pred_fallthru
        _
      %p377 = scmp.lt.s32.totalorder %s26, 2
      // Predicated region
      $region49: #{tpu_custom_call.1} parent=5 // pred_check
        %p378 = pneg %p377
      $region50: #{tpu_custom_call.1} parent=5 // pred_check_branch
        %380 = sbr.rel (%p378) target = $region52
      $region51: #{tpu_custom_call.1} parent=5 // pred_region
        // Predicated region
        $region53: #{tpu_custom_call.1} parent=51 // pred_check
          %p381 = pneg %p46
        $region54: #{tpu_custom_call.1} parent=51 // pred_check_branch
          %383 = sbr.rel (%p381) target = $region56
        $region55: #{tpu_custom_call.1} parent=51 // pred_region
          %s384 = sand.u32 %s36, 1
          %s385 = scalar_lea.sflag [#allocation3], %s384
          %s386 = sand.u32 %s36, 1
          %s387 = smul.addr %s386, 16
          %s388 = scalar_lea.vmem [#allocation2], %s387
          %s390 = ssub.s32 256, 256
          %391 = vsyncadd %s385, %s390
          %s392 = smul.addr %s26, 2
          %s393 = smul.addr %s392, 128
          %s394 = scalar_lea.hbm %s0, %s393
          %s395 = sshll.u32 %s388, 4
          %s396 = int_to_ptr.vmem [resolvable:$true] %s395
          %401 = dma.hbm_to_vmem [thread:$0]  %s394, 256, %s396, %s385, 128, 128, 8
        $region56: #{tpu_custom_call.1} parent=51 // pred_fallthru
          _
      $region52: #{tpu_custom_call.1} parent=5 // pred_fallthru
        _
      %p402 = scmp.le.s32.totalorder 1, %s26
      %p403 = scmp.lt.s32.totalorder %s26, 3
      %p404 = pnand %p402, %p403
      %p405 = pneg %p404
      // Predicated region
      $region57: #{tpu_custom_call.1} parent=5 // pred_check
        _
      $region58: #{tpu_custom_call.1} parent=5 // pred_check_branch
        %407 = sbr.rel (%p404) target = $region60
      $region59: #{tpu_custom_call.1} parent=5 // pred_region
        %s408 = ssub.s32 %s26, 1
        %s409 = sand.u32 %s39, 1
        %s410 = scalar_lea.sflag [#allocation3], %s409
        %s411 = sand.u32 %s39, 1
        %s412 = smul.addr %s411, 16
        %s413 = scalar_lea.vmem [#allocation2], %s412
        // Predicated region
        $region61: #{tpu_custom_call.1} parent=59 // pred_check
          %p414 = pneg %p52
        $region62: #{tpu_custom_call.1} parent=59 // pred_check_branch
          %416 = sbr.rel (%p414) target = $region64
        $region63: #{tpu_custom_call.1} parent=59 // pred_region
          %417 = dma.done %s410, 256
        $region64: #{tpu_custom_call.1} parent=59 // pred_fallthru
          _
        // Predicated region
        $region65: #{tpu_custom_call.1} parent=59 // pred_check
          %p418 = pneg %p73
        $region66: #{tpu_custom_call.1} parent=59 // pred_check_branch
          %420 = sbr.rel (%p418) target = $region68
        $region67: #{tpu_custom_call.1} parent=59 // pred_region
          %421 = dma.done [#allocation6], 128
        $region68: #{tpu_custom_call.1} parent=59 // pred_fallthru
          _
        // Predicated region
        $region69: #{tpu_custom_call.1} parent=59 // pred_check
          %p422 = pneg %p94
        $region70: #{tpu_custom_call.1} parent=59 // pred_check_branch
          %424 = sbr.rel (%p422) target = $region72
        $region71: #{tpu_custom_call.1} parent=59 // pred_region
          %425 = dma.done [#allocation6], 512
        $region72: #{tpu_custom_call.1} parent=59 // pred_fallthru
          _
        // Predicated region
        $region73: #{tpu_custom_call.1} parent=59 // pred_check
          %p426 = pneg %p115
        $region74: #{tpu_custom_call.1} parent=59 // pred_check_branch
          %428 = sbr.rel (%p426) target = $region76
        $region75: #{tpu_custom_call.1} parent=59 // pred_region
          %429 = dma.done [#allocation9], 1024
        $region76: #{tpu_custom_call.1} parent=59 // pred_fallthru
          _
        // Predicated region
        $region77: #{tpu_custom_call.1} parent=59 // pred_check
          %p430 = pneg %p136
        $region78: #{tpu_custom_call.1} parent=59 // pred_check_branch
          %432 = sbr.rel (%p430) target = $region80
        $region79: #{tpu_custom_call.1} parent=59 // pred_region
          %433 = dma.done [#allocation9], 512
        $region80: #{tpu_custom_call.1} parent=59 // pred_fallthru
          _
        // Predicated region
        $region81: #{tpu_custom_call.1} parent=59 // pred_check
          %p434 = pneg %p178
        $region82: #{tpu_custom_call.1} parent=59 // pred_check_branch
          %436 = sbr.rel (%p434) target = $region84
        $region83: #{tpu_custom_call.1} parent=59 // pred_region
          %437 = dma.done [#allocation12], 512
        $region84: #{tpu_custom_call.1} parent=59 // pred_fallthru
          _
        // Predicated region
        $region85: #{tpu_custom_call.1} parent=59 // pred_check
          %p438 = pneg %p199
        $region86: #{tpu_custom_call.1} parent=59 // pred_check_branch
          %440 = sbr.rel (%p438) target = $region88
        $region87: #{tpu_custom_call.1} parent=59 // pred_region
          %441 = dma.done [#allocation12], 1024
        $region88: #{tpu_custom_call.1} parent=59 // pred_fallthru
          _
        // Predicated region
        $region89: #{tpu_custom_call.1} parent=59 // pred_check
          %p442 = pneg %p220
        $region90: #{tpu_custom_call.1} parent=59 // pred_check_branch
          %444 = sbr.rel (%p442) target = $region92
        $region91: #{tpu_custom_call.1} parent=59 // pred_region
          %445 = dma.done [#allocation15], 512
        $region92: #{tpu_custom_call.1} parent=59 // pred_fallthru
          _
        %s446 = sand.u32 %s39, 1
        %s447 = scalar_lea.sflag [#allocation3], %s446
        %s448 = sand.u32 %s39, 1
        %s449 = smul.addr %s448, 16
        %s450 = scalar_lea.vmem [#allocation2], %s449
        %p451 = pneg %p52
        %p452 = pneg %p49
        %p453 = pneg %p73
        %p454 = pneg %p70
        %p455 = pneg %p94
        %p456 = pneg %p91
        %p457 = pneg %p115
        %p458 = pneg %p112
        %p459 = pneg %p136
        %p460 = pneg %p133
        %p461 = pneg %p157
        %p462 = pneg %p154
        %p463 = pneg %p178
        %p464 = pneg %p175
        %p465 = pneg %p199
        %p466 = pneg %p196
        %p467 = pneg %p220
        %p468 = pneg %p217
        %p469 = pneg %p241
        %p470 = pneg %p238
        %p471 = pneg %p267
        %p472 = pneg %p264
        %s473 = sand.u32 %s254, 1
        %s474 = scalar_lea.sflag [#allocation4], %s473
        %s475 = sand.u32 %s254, 1
        %s476 = smul.addr %s475, 16
        %s477 = scalar_lea.vmem [#allocation16], %s476
        %v479 = vld [vmem:[%s413] sm:$0xff]
        %v480 = vld [vmem:[%s413 + $0x8] sm:$0xff]
        %v481 = vld [vmem:[#allocation5] sm:$0xff]
        %v482 = vld [vmem:[#allocation7] sm:$0xff]
        %v483 = vld [vmem:[#allocation7 + $0x8] sm:$0xff]
        %v484 = vld [vmem:[#allocation7 + $0x10] sm:$0xff]
        %v485 = vld [vmem:[#allocation7 + $0x18] sm:$0xff]
        %v486 = vld [vmem:[#allocation8] sm:$0xff]
        %v487 = vld [vmem:[#allocation8 + $0x8] sm:$0xff]
        %v488 = vld [vmem:[#allocation8 + $0x10] sm:$0xff]
        %v489 = vld [vmem:[#allocation8 + $0x18] sm:$0xff]
        %v490 = vld [vmem:[#allocation8 + $0x20] sm:$0xff]
        %v491 = vld [vmem:[#allocation8 + $0x28] sm:$0xff]
        %v492 = vld [vmem:[#allocation8 + $0x30] sm:$0xff]
        %v493 = vld [vmem:[#allocation8 + $0x38] sm:$0xff]
        %v494 = vld [vmem:[#allocation10] sm:$0xff]
        %v495 = vld [vmem:[#allocation10 + $0x8] sm:$0xff]
        %v496 = vld [vmem:[#allocation10 + $0x10] sm:$0xff]
        %v497 = vld [vmem:[#allocation10 + $0x18] sm:$0xff]
        %v498 = vld [vmem:[%s5] sm:$0xf]
        %v499 = vlaneseq
        %v500 = vshrl.u32 %v499, 7
        %v501 = vsub.s32 0, %v500
        %v502 = vrot.slane %v498, %v501
        %vm503 = vcmask 261120
        %v505 = vsel %vm503, %v481, 0
        %507 = vmatprep.subr.mxu0 0.0
        %508 = vmatpush1.msra.mxu0 0.0
        %509 = vmatprep.subr.mxu0 0.0
        %510 = vmatpush1.msra.mxu0 0.0
        %511 = vmatprep.subr.mxu0 0.0
        %512 = vmatpush1.msra.mxu0 0.0
        %513 = vmatprep.subr.mxu0 0.0
        %514 = vmatpush1.msra.mxu0 0.0
        %515 = vmatprep.subr.mxu0 0.0
        %516 = vmatpush1.msra.mxu0 0.0
        %517 = vmatprep.subr.mxu0 0.0
        %518 = vmatpush1.msra.mxu0 0.0
        %519 = vmatprep.subr.mxu0 0.0
        %520 = vmatpush1.msra.mxu0 0.0
        %521 = vmatprep.subr.mxu0 0.0
        %522 = vmatpush1.msra.mxu0 0.0
        %523 = vmatprep.subr.mxu0 0.0
        %524 = vmatpush1.msra.mxu0 0.0
        %525 = vmatprep.subr.mxu0 0.0
        %526 = vmatpush1.msra.mxu0 0.0
        %527 = vmatprep.subr.mxu0 0.0
        %528 = vmatpush1.msra.mxu0 0.0
        %529 = vmatprep.subr.mxu0 0.0
        %530 = vmatpush1.msra.mxu0 0.0
        %531 = vmatprep.subr.mxu0 0.0
        %532 = vmatpush1.msra.mxu0 %v485
        %533 = vmatprep.subr.mxu0 0.0
        %534 = vmatpush1.msra.mxu0 %v484
        %535 = vmatprep.subr.mxu0 0.0
        %536 = vmatpush1.msra.mxu0 %v483
        %537 = vmatprep.subr.mxu0 0.0
        %538 = vmatpush1.msra.mxu0 %v482
        %539 = vmatprep.subr.mxu0 0.0
        %540 = vmatpush2.msra.mxu0 0.0
        %541 = vmatprep.subr.mxu0 0.0
        %542 = vmatpush2.msra.mxu0 0.0
        %543 = vmatprep.subr.mxu0 0.0
        %544 = vmatpush2.msra.mxu0 0.0
        %545 = vmatprep.subr.mxu0 0.0
        %546 = vmatpush2.msra.mxu0 0.0
        %547 = vmatprep.subr.mxu0 0.0
        %548 = vmatpush2.msra.mxu0 0.0
        %549 = vmatprep.subr.mxu0 0.0
        %550 = vmatpush2.msra.mxu0 0.0
        %551 = vmatprep.subr.mxu0 0.0
        %552 = vmatpush2.msra.mxu0 0.0
        %553 = vmatprep.subr.mxu0 0.0
        %554 = vmatpush2.msra.mxu0 0.0
        %555 = vmatprep.subr.mxu0 0.0
        %556 = vmatpush2.msra.mxu0 0.0
        %557 = vmatprep.subr.mxu0 0.0
        %558 = vmatpush2.msra.mxu0 0.0
        %559 = vmatprep.subr.mxu0 0.0
        %560 = vmatpush2.msra.mxu0 0.0
        %561 = vmatprep.subr.mxu0 0.0
        %562 = vmatpush2.msra.mxu0 0.0
        %563 = vmatprep.subr.mxu0 0.0
        %564 = vmatpush2.msra.mxu0 0.0
        %565 = vmatprep.subr.mxu0 0.0
        %566 = vmatpush2.msra.mxu0 0.0
        %567 = vmatprep.subr.mxu0 0.0
        %568 = vmatpush2.msra.mxu0 0.0
        %569 = vmatprep.subr.mxu0 0.0
        %570 = vmatpush2.msra.mxu0 0.0
        %571 = vmatprep.mubr.f32.mxu0 0.0
        %572 = vmatmul.mubr.f32.gmra.mxu0 %v505
        %v573 = vpop.f32.mrf.mxu0
        %v574 = vadd.f32 %v502, %v573
        %v575 = vpop.f32.mrf.mxu0
        %576 = vdwg.mxu0
        %v577 = vlaneseq
        %v578 = vshrl.u32 %v577, 7
        %v579 = vsub.s32 1, %v578
        %v580 = vrot.slane %v498, %v579
        %v582 = vsel %vm503, %v479, 0
        %v585 = vsel %vm503, %v480, 0
        %587 = vmatprep.subr.mxu0 0.0
        %588 = vmatpush1.msra.mxu0 0.0
        %589 = vmatprep.subr.mxu0 0.0
        %590 = vmatpush1.msra.mxu0 0.0
        %591 = vmatprep.subr.mxu0 0.0
        %592 = vmatpush1.msra.mxu0 0.0
        %593 = vmatprep.subr.mxu0 0.0
        %594 = vmatpush1.msra.mxu0 0.0
        %595 = vmatprep.subr.mxu0 0.0
        %596 = vmatpush1.msra.mxu0 0.0
        %597 = vmatprep.subr.mxu0 0.0
        %598 = vmatpush1.msra.mxu0 0.0
        %599 = vmatprep.subr.mxu0 0.0
        %600 = vmatpush1.msra.mxu0 0.0
        %601 = vmatprep.subr.mxu0 0.0
        %602 = vmatpush1.msra.mxu0 0.0
        %603 = vmatprep.subr.mxu0 0.0
        %604 = vmatpush1.msra.mxu0 0.0
        %605 = vmatprep.subr.mxu0 0.0
        %606 = vmatpush1.msra.mxu0 0.0
        %607 = vmatprep.subr.mxu0 0.0
        %608 = vmatpush1.msra.mxu0 0.0
        %609 = vmatprep.subr.mxu0 0.0
        %610 = vmatpush1.msra.mxu0 0.0
        %611 = vmatprep.subr.mxu0 0.0
        %612 = vmatpush1.msra.mxu0 %v489
        %613 = vmatprep.subr.mxu0 0.0
        %614 = vmatpush1.msra.mxu0 %v488
        %615 = vmatprep.subr.mxu0 0.0
        %616 = vmatpush1.msra.mxu0 %v487
        %617 = vmatprep.subr.mxu0 0.0
        %618 = vmatpush1.msra.mxu0 %v486
        %619 = vmatprep.subr.mxu0 0.0
        %620 = vmatpush2.msra.mxu0 0.0
        %621 = vmatprep.subr.mxu0 0.0
        %622 = vmatpush2.msra.mxu0 0.0
        %623 = vmatprep.subr.mxu0 0.0
        %624 = vmatpush2.msra.mxu0 0.0
        %625 = vmatprep.subr.mxu0 0.0
        %626 = vmatpush2.msra.mxu0 0.0
        %627 = vmatprep.subr.mxu0 0.0
        %628 = vmatpush2.msra.mxu0 0.0
        %629 = vmatprep.subr.mxu0 0.0
        %630 = vmatpush2.msra.mxu0 0.0
        %631 = vmatprep.subr.mxu0 0.0
        %632 = vmatpush2.msra.mxu0 0.0
        %633 = vmatprep.subr.mxu0 0.0
        %634 = vmatpush2.msra.mxu0 0.0
        %635 = vmatprep.subr.mxu0 0.0
        %636 = vmatpush2.msra.mxu0 0.0
        %637 = vmatprep.subr.mxu0 0.0
        %638 = vmatpush2.msra.mxu0 0.0
        %639 = vmatprep.subr.mxu0 0.0
        %640 = vmatpush2.msra.mxu0 0.0
        %641 = vmatprep.subr.mxu0 0.0
        %642 = vmatpush2.msra.mxu0 0.0
        %643 = vmatprep.subr.mxu0 0.0
        %644 = vmatpush2.msra.mxu0 0.0
        %645 = vmatprep.subr.mxu0 0.0
        %646 = vmatpush2.msra.mxu0 0.0
        %647 = vmatprep.subr.mxu0 0.0
        %648 = vmatpush2.msra.mxu0 0.0
        %649 = vmatprep.subr.mxu0 0.0
        %650 = vmatpush2.msra.mxu0 0.0
        %651 = vmatprep.mubr.f32.mxu0 0.0
        %652 = vmatmul.mubr.f32.gmra.mxu0 %v582
        %v653 = vpop.f32.mrf.mxu0
        %v654 = vadd.f32 %v580, %v653
        %v655 = vpop.f32.mrf.mxu0
        %656 = vmatprep.mubr.f32.mxu0 0.0
        %657 = vmatmul.mubr.f32.gmra.mxu0 %v585
        %v658 = vpop.f32.mrf.mxu0
        %v659 = vadd.f32 %v580, %v658
        %v660 = vpop.f32.mrf.mxu0
        %661 = vdwg.mxu0
        %v662 = vlaneseq
        %v663 = vshrl.u32 %v662, 7
        %v664 = vsub.s32 2, %v663
        %v665 = vrot.slane %v498, %v664
        %666 = vmatprep.subr.mxu0 0.0
        %667 = vmatpush1.msra.mxu0 0.0
        %668 = vmatprep.subr.mxu0 0.0
        %669 = vmatpush1.msra.mxu0 0.0
        %670 = vmatprep.subr.mxu0 0.0
        %671 = vmatpush1.msra.mxu0 0.0
        %672 = vmatprep.subr.mxu0 0.0
        %673 = vmatpush1.msra.mxu0 0.0
        %674 = vmatprep.subr.mxu0 0.0
        %675 = vmatpush1.msra.mxu0 0.0
        %676 = vmatprep.subr.mxu0 0.0
        %677 = vmatpush1.msra.mxu0 0.0
        %678 = vmatprep.subr.mxu0 0.0
        %679 = vmatpush1.msra.mxu0 0.0
        %680 = vmatprep.subr.mxu0 0.0
        %681 = vmatpush1.msra.mxu0 0.0
        %682 = vmatprep.subr.mxu0 0.0
        %683 = vmatpush1.msra.mxu0 0.0
        %684 = vmatprep.subr.mxu0 0.0
        %685 = vmatpush1.msra.mxu0 0.0
        %686 = vmatprep.subr.mxu0 0.0
        %687 = vmatpush1.msra.mxu0 0.0
        %688 = vmatprep.subr.mxu0 0.0
        %689 = vmatpush1.msra.mxu0 0.0
        %690 = vmatprep.subr.mxu0 0.0
        %691 = vmatpush1.msra.mxu0 %v493
        %692 = vmatprep.subr.mxu0 0.0
        %693 = vmatpush1.msra.mxu0 %v492
        %694 = vmatprep.subr.mxu0 0.0
        %695 = vmatpush1.msra.mxu0 %v491
        %696 = vmatprep.subr.mxu0 0.0
        %697 = vmatpush1.msra.mxu0 %v490
        %698 = vmatprep.subr.mxu0 0.0
        %699 = vmatpush2.msra.mxu0 0.0
        %700 = vmatprep.subr.mxu0 0.0
        %701 = vmatpush2.msra.mxu0 0.0
        %702 = vmatprep.subr.mxu0 0.0
        %703 = vmatpush2.msra.mxu0 0.0
        %704 = vmatprep.subr.mxu0 0.0
        %705 = vmatpush2.msra.mxu0 0.0
        %706 = vmatprep.subr.mxu0 0.0
        %707 = vmatpush2.msra.mxu0 0.0
        %708 = vmatprep.subr.mxu0 0.0
        %709 = vmatpush2.msra.mxu0 0.0
        %710 = vmatprep.subr.mxu0 0.0
        %711 = vmatpush2.msra.mxu0 0.0
        %712 = vmatprep.subr.mxu0 0.0
        %713 = vmatpush2.msra.mxu0 0.0
        %714 = vmatprep.subr.mxu0 0.0
        %715 = vmatpush2.msra.mxu0 0.0
        %716 = vmatprep.subr.mxu0 0.0
        %717 = vmatpush2.msra.mxu0 0.0
        %718 = vmatprep.subr.mxu0 0.0
        %719 = vmatpush2.msra.mxu0 0.0
        %720 = vmatprep.subr.mxu0 0.0
        %721 = vmatpush2.msra.mxu0 0.0
        %722 = vmatprep.subr.mxu0 0.0
        %723 = vmatpush2.msra.mxu0 0.0
        %724 = vmatprep.subr.mxu0 0.0
        %725 = vmatpush2.msra.mxu0 0.0
        %726 = vmatprep.subr.mxu0 0.0
        %727 = vmatpush2.msra.mxu0 0.0
        %728 = vmatprep.subr.mxu0 0.0
        %729 = vmatpush2.msra.mxu0 0.0
        %730 = vmatprep.mubr.f32.mxu0 0.0
        %731 = vmatmul.mubr.f32.gmra.mxu0 %v582
        %v732 = vpop.f32.mrf.mxu0
        %v733 = vadd.f32 %v665, %v732
        %v734 = vpop.f32.mrf.mxu0
        %735 = vmatprep.mubr.f32.mxu0 0.0
        %736 = vmatmul.mubr.f32.gmra.mxu0 %v585
        %v737 = vpop.f32.mrf.mxu0
        %v738 = vadd.f32 %v665, %v737
        %v739 = vpop.f32.mrf.mxu0
        %740 = vdwg.mxu0
        %742 = vrot.lane.b32.xlu0 %v574, 120
        %v743 = vpop.permute.xlu0 %742
        %745 = vrot.lane.b32.xlu0 %v574, 112
        %v746 = vpop.permute.xlu0 %745
        %748 = vrot.lane.b32.xlu0 %v574, 104
        %v749 = vpop.permute.xlu0 %748
        %v751 = vpack.c.bf16 %v574, %v574
        %v752 = vpack.c.bf16 %v743, %v743
        %v753 = vpack.c.bf16 %v746, %v746
        %v754 = vpack.c.bf16 %v749, %v749
        %757 = vrot.lane.b32.xlu0 %v654, 120
        %v758 = vpop.permute.xlu0 %757
        %759 = vrot.lane.b32.xlu0 %v659, 120
        %v760 = vpop.permute.xlu0 %759
        %763 = vrot.lane.b32.xlu0 %v654, 112
        %v764 = vpop.permute.xlu0 %763
        %765 = vrot.lane.b32.xlu0 %v659, 112
        %v766 = vpop.permute.xlu0 %765
        %769 = vrot.lane.b32.xlu0 %v654, 104
        %v770 = vpop.permute.xlu0 %769
        %771 = vrot.lane.b32.xlu0 %v659, 104
        %v772 = vpop.permute.xlu0 %771
        %v775 = vpack.c.bf16 %v659, %v654
        %v776 = vpack.c.bf16 %v760, %v758
        %v777 = vpack.c.bf16 %v766, %v764
        %v778 = vpack.c.bf16 %v772, %v770
        %781 = vrot.lane.b32.xlu0 %v733, 120
        %v782 = vpop.permute.xlu0 %781
        %783 = vrot.lane.b32.xlu0 %v738, 120
        %v784 = vpop.permute.xlu0 %783
        %787 = vrot.lane.b32.xlu0 %v733, 112
        %v788 = vpop.permute.xlu0 %787
        %789 = vrot.lane.b32.xlu0 %v738, 112
        %v790 = vpop.permute.xlu0 %789
        %793 = vrot.lane.b32.xlu0 %v733, 104
        %v794 = vpop.permute.xlu0 %793
        %795 = vrot.lane.b32.xlu0 %v738, 104
        %v796 = vpop.permute.xlu0 %795
        %v799 = vpack.c.bf16 %v738, %v733
        %v800 = vpack.c.bf16 %v784, %v782
        %v801 = vpack.c.bf16 %v790, %v788
        %v802 = vpack.c.bf16 %v796, %v794
        %vm803 = vcmask 64512
        %v805 = vsel %vm803, %v751, 0
        %v808 = vsel %vm803, %v775, 0
        %810 = vmatprep.subr.bf16.mxu0 0
        %811 = vmatpush1.bf16.xpose.msra.mxu0 0
        %812 = vmatprep.subr.bf16.mxu0 0
        %813 = vmatpush1.bf16.xpose.msra.mxu0 0
        %814 = vmatprep.subr.bf16.mxu0 0
        %815 = vmatpush1.bf16.xpose.msra.mxu0 0
        %816 = vmatprep.subr.bf16.mxu0 0
        %817 = vmatpush1.bf16.xpose.msra.mxu0 0
        %818 = vmatprep.subr.bf16.mxu0 0
        %819 = vmatpush1.bf16.xpose.msra.mxu0 0
        %820 = vmatprep.subr.bf16.mxu0 0
        %821 = vmatpush1.bf16.xpose.msra.mxu0 0
        %822 = vmatprep.subr.bf16.mxu0 0
        %823 = vmatpush1.bf16.xpose.msra.mxu0 0
        %824 = vmatprep.subr.bf16.mxu0 0
        %825 = vmatpush1.bf16.xpose.msra.mxu0 %v808
        %826 = vmatprep.subr.bf16.mxu0 0
        %827 = vmatpush2.bf16.xpose.msra.mxu0 0
        %828 = vmatprep.subr.bf16.mxu0 0
        %829 = vmatpush2.bf16.xpose.msra.mxu0 0
        %830 = vmatprep.subr.bf16.mxu0 0
        %831 = vmatpush2.bf16.xpose.msra.mxu0 0
        %832 = vmatprep.subr.bf16.mxu0 0
        %833 = vmatpush2.bf16.xpose.msra.mxu0 0
        %834 = vmatprep.subr.bf16.mxu0 0
        %835 = vmatpush2.bf16.xpose.msra.mxu0 0
        %836 = vmatprep.subr.bf16.mxu0 0
        %837 = vmatpush2.bf16.xpose.msra.mxu0 0
        %838 = vmatprep.subr.bf16.mxu0 0
        %839 = vmatpush2.bf16.xpose.msra.mxu0 0
        %840 = vmatprep.subr.bf16.mxu0 0
        %841 = vmatpush2.bf16.xpose.msra.mxu0 0
        %842 = vmatprep.mubr.bf16.mxu0 0
        %843 = vmatmul.mubr.bf16.gmra.mxu0 %v805
        %v844 = vpop.f32.mrf.mxu0
        %v845 = vadd.f32 0.0, %v844
        %v846 = vpop.f32.mrf.mxu0
        %v847 = vpop.f32.mrf.mxu0
        %v848 = vpop.f32.mrf.mxu0
        %849 = vdwg.mxu0
        %v851 = vsel %vm803, %v752, 0
        %v854 = vsel %vm803, %v776, 0
        %856 = vmatprep.subr.bf16.mxu0 0
        %857 = vmatpush1.bf16.xpose.msra.mxu0 0
        %858 = vmatprep.subr.bf16.mxu0 0
        %859 = vmatpush1.bf16.xpose.msra.mxu0 0
        %860 = vmatprep.subr.bf16.mxu0 0
        %861 = vmatpush1.bf16.xpose.msra.mxu0 0
        %862 = vmatprep.subr.bf16.mxu0 0
        %863 = vmatpush1.bf16.xpose.msra.mxu0 0
        %864 = vmatprep.subr.bf16.mxu0 0
        %865 = vmatpush1.bf16.xpose.msra.mxu0 0
        %866 = vmatprep.subr.bf16.mxu0 0
        %867 = vmatpush1.bf16.xpose.msra.mxu0 0
        %868 = vmatprep.subr.bf16.mxu0 0
        %869 = vmatpush1.bf16.xpose.msra.mxu0 0
        %870 = vmatprep.subr.bf16.mxu0 0
        %871 = vmatpush1.bf16.xpose.msra.mxu0 %v854
        %872 = vmatprep.subr.bf16.mxu0 0
        %873 = vmatpush2.bf16.xpose.msra.mxu0 0
        %874 = vmatprep.subr.bf16.mxu0 0
        %875 = vmatpush2.bf16.xpose.msra.mxu0 0
        %876 = vmatprep.subr.bf16.mxu0 0
        %877 = vmatpush2.bf16.xpose.msra.mxu0 0
        %878 = vmatprep.subr.bf16.mxu0 0
        %879 = vmatpush2.bf16.xpose.msra.mxu0 0
        %880 = vmatprep.subr.bf16.mxu0 0
        %881 = vmatpush2.bf16.xpose.msra.mxu0 0
        %882 = vmatprep.subr.bf16.mxu0 0
        %883 = vmatpush2.bf16.xpose.msra.mxu0 0
        %884 = vmatprep.subr.bf16.mxu0 0
        %885 = vmatpush2.bf16.xpose.msra.mxu0 0
        %886 = vmatprep.subr.bf16.mxu0 0
        %887 = vmatpush2.bf16.xpose.msra.mxu0 0
        %888 = vmatprep.mubr.bf16.mxu0 0
        %889 = vmatmul.mubr.bf16.gmra.mxu0 %v851
        %v890 = vpop.f32.mrf.mxu0
        %v891 = vadd.f32 0.0, %v890
        %v892 = vpop.f32.mrf.mxu0
        %v893 = vpop.f32.mrf.mxu0
        %v894 = vpop.f32.mrf.mxu0
        %895 = vdwg.mxu0
        %v897 = vsel %vm803, %v753, 0
        %v900 = vsel %vm803, %v777, 0
        %902 = vmatprep.subr.bf16.mxu0 0
        %903 = vmatpush1.bf16.xpose.msra.mxu0 0
        %904 = vmatprep.subr.bf16.mxu0 0
        %905 = vmatpush1.bf16.xpose.msra.mxu0 0
        %906 = vmatprep.subr.bf16.mxu0 0
        %907 = vmatpush1.bf16.xpose.msra.mxu0 0
        %908 = vmatprep.subr.bf16.mxu0 0
        %909 = vmatpush1.bf16.xpose.msra.mxu0 0
        %910 = vmatprep.subr.bf16.mxu0 0
        %911 = vmatpush1.bf16.xpose.msra.mxu0 0
        %912 = vmatprep.subr.bf16.mxu0 0
        %913 = vmatpush1.bf16.xpose.msra.mxu0 0
        %914 = vmatprep.subr.bf16.mxu0 0
        %915 = vmatpush1.bf16.xpose.msra.mxu0 0
        %916 = vmatprep.subr.bf16.mxu0 0
        %917 = vmatpush1.bf16.xpose.msra.mxu0 %v900
        %918 = vmatprep.subr.bf16.mxu0 0
        %919 = vmatpush2.bf16.xpose.msra.mxu0 0
        %920 = vmatprep.subr.bf16.mxu0 0
        %921 = vmatpush2.bf16.xpose.msra.mxu0 0
        %922 = vmatprep.subr.bf16.mxu0 0
        %923 = vmatpush2.bf16.xpose.msra.mxu0 0
        %924 = vmatprep.subr.bf16.mxu0 0
        %925 = vmatpush2.bf16.xpose.msra.mxu0 0
        %926 = vmatprep.subr.bf16.mxu0 0
        %927 = vmatpush2.bf16.xpose.msra.mxu0 0
        %928 = vmatprep.subr.bf16.mxu0 0
        %929 = vmatpush2.bf16.xpose.msra.mxu0 0
        %930 = vmatprep.subr.bf16.mxu0 0
        %931 = vmatpush2.bf16.xpose.msra.mxu0 0
        %932 = vmatprep.subr.bf16.mxu0 0
        %933 = vmatpush2.bf16.xpose.msra.mxu0 0
        %934 = vmatprep.mubr.bf16.mxu0 0
        %935 = vmatmul.mubr.bf16.gmra.mxu0 %v897
        %v936 = vpop.f32.mrf.mxu0
        %v937 = vadd.f32 0.0, %v936
        %v938 = vpop.f32.mrf.mxu0
        %v939 = vpop.f32.mrf.mxu0
        %v940 = vpop.f32.mrf.mxu0
        %941 = vdwg.mxu0
        %v943 = vsel %vm803, %v754, 0
        %v946 = vsel %vm803, %v778, 0
        %948 = vmatprep.subr.bf16.mxu0 0
        %949 = vmatpush1.bf16.xpose.msra.mxu0 0
        %950 = vmatprep.subr.bf16.mxu0 0
        %951 = vmatpush1.bf16.xpose.msra.mxu0 0
        %952 = vmatprep.subr.bf16.mxu0 0
        %953 = vmatpush1.bf16.xpose.msra.mxu0 0
        %954 = vmatprep.subr.bf16.mxu0 0
        %955 = vmatpush1.bf16.xpose.msra.mxu0 0
        %956 = vmatprep.subr.bf16.mxu0 0
        %957 = vmatpush1.bf16.xpose.msra.mxu0 0
        %958 = vmatprep.subr.bf16.mxu0 0
        %959 = vmatpush1.bf16.xpose.msra.mxu0 0
        %960 = vmatprep.subr.bf16.mxu0 0
        %961 = vmatpush1.bf16.xpose.msra.mxu0 0
        %962 = vmatprep.subr.bf16.mxu0 0
        %963 = vmatpush1.bf16.xpose.msra.mxu0 %v946
        %964 = vmatprep.subr.bf16.mxu0 0
        %965 = vmatpush2.bf16.xpose.msra.mxu0 0
        %966 = vmatprep.subr.bf16.mxu0 0
        %967 = vmatpush2.bf16.xpose.msra.mxu0 0
        %968 = vmatprep.subr.bf16.mxu0 0
        %969 = vmatpush2.bf16.xpose.msra.mxu0 0
        %970 = vmatprep.subr.bf16.mxu0 0
        %971 = vmatpush2.bf16.xpose.msra.mxu0 0
        %972 = vmatprep.subr.bf16.mxu0 0
        %973 = vmatpush2.bf16.xpose.msra.mxu0 0
        %974 = vmatprep.subr.bf16.mxu0 0
        %975 = vmatpush2.bf16.xpose.msra.mxu0 0
        %976 = vmatprep.subr.bf16.mxu0 0
        %977 = vmatpush2.bf16.xpose.msra.mxu0 0
        %978 = vmatprep.subr.bf16.mxu0 0
        %979 = vmatpush2.bf16.xpose.msra.mxu0 0
        %980 = vmatprep.mubr.bf16.mxu0 0
        %981 = vmatmul.mubr.bf16.gmra.mxu0 %v943
        %v982 = vpop.f32.mrf.mxu0
        %v983 = vadd.f32 0.0, %v982
        %v984 = vpop.f32.mrf.mxu0
        %v985 = vpop.f32.mrf.mxu0
        %v986 = vpop.f32.mrf.mxu0
        %987 = vdwg.mxu0
        %v988 = vmul.f32 %v845, 0.17677669
        %v989 = vmul.f32 %v891, 0.17677669
        %v990 = vmul.f32 %v937, 0.17677669
        %v991 = vmul.f32 %v983, 0.17677669
        %vm992 = vcmask 130048
        %v993 = vsel %vm992, %v988, -inf
        %994 = vmax.xlane.f32.xlu0 %v993
        %v995 = vpop.xlane.xlu0 %994
        %v996 = vsel %vm992, %v989, -inf
        %997 = vmax.xlane.f32.xlu0 %v996
        %v998 = vpop.xlane.xlu0 %997
        %v999 = vsel %vm992, %v990, -inf
        %1000 = vmax.xlane.f32.xlu0 %v999
        %v1001 = vpop.xlane.xlu0 %1000
        %v1002 = vsel %vm992, %v991, -inf
        %1003 = vmax.xlane.f32.xlu0 %v1002
        %v1004 = vpop.xlane.xlu0 %1003
        %v1005 = vsub.f32 %v988, %v995
        %v1006 = vsub.f32 %v989, %v998
        %v1007 = vsub.f32 %v990, %v1001
        %v1008 = vsub.f32 %v991, %v1004
        %v1009 = vmul.f32 %v1005, 1.442695
        %v1010 = vpow.pop %v1009
        %v1011 = vmul.f32 %v1006, 1.442695
        %v1012 = vpow.pop %v1011
        %v1013 = vmul.f32 %v1007, 1.442695
        %v1014 = vpow.pop %v1013
        %v1015 = vmul.f32 %v1008, 1.442695
        %v1016 = vpow.pop %v1015
        %v1017 = vsel %vm992, %v1010, 0.0
        %1018 = vadd.xlane.f32.xlu0 %v1017
        %v1019 = vpop.xlane.xlu0 %1018
        %v1020 = vsel %vm992, %v1012, 0.0
        %1021 = vadd.xlane.f32.xlu0 %v1020
        %v1022 = vpop.xlane.xlu0 %1021
        %v1023 = vsel %vm992, %v1014, 0.0
        %1024 = vadd.xlane.f32.xlu0 %v1023
        %v1025 = vpop.xlane.xlu0 %1024
        %v1026 = vsel %vm992, %v1016, 0.0
        %1027 = vadd.xlane.f32.xlu0 %v1026
        %v1028 = vpop.xlane.xlu0 %1027
        %v1029 = vrcp.pop %v1019
        %v1030 = vrcp.pop %v1022
        %v1031 = vrcp.pop %v1025
        %v1032 = vrcp.pop %v1028
        %v1033 = vmul.f32 %v1010, %v1029
        %v1034 = vmul.f32 %v1012, %v1030
        %v1035 = vmul.f32 %v1014, %v1031
        %v1036 = vmul.f32 %v1016, %v1032
        %v1037 = vpack.c.bf16 %v1033, %v1033
        %v1038 = vpack.c.bf16 %v1034, %v1034
        %v1039 = vpack.c.bf16 %v1035, %v1035
        %v1040 = vpack.c.bf16 %v1036, %v1036
        %v1042 = vsel %vm992, %v1037, 0
        %1044 = vmatprep.subr.bf16.mxu0 0
        %1045 = vmatpush1.bf16.msra.mxu0 0
        %1046 = vmatprep.subr.bf16.mxu0 0
        %1047 = vmatpush1.bf16.msra.mxu0 0
        %1048 = vmatprep.subr.bf16.mxu0 0
        %1049 = vmatpush1.bf16.msra.mxu0 0
        %1050 = vmatprep.subr.bf16.mxu0 0
        %1051 = vmatpush1.bf16.msra.mxu0 0
        %1052 = vmatprep.subr.bf16.mxu0 0
        %1053 = vmatpush1.bf16.msra.mxu0 0
        %1054 = vmatprep.subr.bf16.mxu0 0
        %1055 = vmatpush1.bf16.msra.mxu0 0
        %1056 = vmatprep.subr.bf16.mxu0 0
        %1057 = vmatpush1.bf16.msra.mxu0 0
        %1058 = vmatprep.subr.bf16.mxu0 0
        %1059 = vmatpush1.bf16.msra.mxu0 %v799
        %1060 = vmatprep.subr.bf16.mxu0 0
        %1061 = vmatpush2.bf16.msra.mxu0 0
        %1062 = vmatprep.subr.bf16.mxu0 0
        %1063 = vmatpush2.bf16.msra.mxu0 0
        %1064 = vmatprep.subr.bf16.mxu0 0
        %1065 = vmatpush2.bf16.msra.mxu0 0
        %1066 = vmatprep.subr.bf16.mxu0 0
        %1067 = vmatpush2.bf16.msra.mxu0 0
        %1068 = vmatprep.subr.bf16.mxu0 0
        %1069 = vmatpush2.bf16.msra.mxu0 0
        %1070 = vmatprep.subr.bf16.mxu0 0
        %1071 = vmatpush2.bf16.msra.mxu0 0
        %1072 = vmatprep.subr.bf16.mxu0 0
        %1073 = vmatpush2.bf16.msra.mxu0 0
        %1074 = vmatprep.subr.bf16.mxu0 0
        %1075 = vmatpush2.bf16.msra.mxu0 0
        %1076 = vmatprep.mubr.bf16.mxu0 0
        %1077 = vmatmul.mubr.bf16.gmra.mxu0 %v1042
        %v1078 = vpop.f32.mrf.mxu0
        %v1079 = vadd.f32 0.0, %v1078
        %v1080 = vpop.f32.mrf.mxu0
        %v1081 = vpop.f32.mrf.mxu0
        %v1082 = vpop.f32.mrf.mxu0
        %1083 = vdwg.mxu0
        %v1085 = vsel %vm992, %v1038, 0
        %1087 = vmatprep.subr.bf16.mxu0 0
        %1088 = vmatpush1.bf16.msra.mxu0 0
        %1089 = vmatprep.subr.bf16.mxu0 0
        %1090 = vmatpush1.bf16.msra.mxu0 0
        %1091 = vmatprep.subr.bf16.mxu0 0
        %1092 = vmatpush1.bf16.msra.mxu0 0
        %1093 = vmatprep.subr.bf16.mxu0 0
        %1094 = vmatpush1.bf16.msra.mxu0 0
        %1095 = vmatprep.subr.bf16.mxu0 0
        %1096 = vmatpush1.bf16.msra.mxu0 0
        %1097 = vmatprep.subr.bf16.mxu0 0
        %1098 = vmatpush1.bf16.msra.mxu0 0
        %1099 = vmatprep.subr.bf16.mxu0 0
        %1100 = vmatpush1.bf16.msra.mxu0 0
        %1101 = vmatprep.subr.bf16.mxu0 0
        %1102 = vmatpush1.bf16.msra.mxu0 %v800
        %1103 = vmatprep.subr.bf16.mxu0 0
        %1104 = vmatpush2.bf16.msra.mxu0 0
        %1105 = vmatprep.subr.bf16.mxu0 0
        %1106 = vmatpush2.bf16.msra.mxu0 0
        %1107 = vmatprep.subr.bf16.mxu0 0
        %1108 = vmatpush2.bf16.msra.mxu0 0
        %1109 = vmatprep.subr.bf16.mxu0 0
        %1110 = vmatpush2.bf16.msra.mxu0 0
        %1111 = vmatprep.subr.bf16.mxu0 0
        %1112 = vmatpush2.bf16.msra.mxu0 0
        %1113 = vmatprep.subr.bf16.mxu0 0
        %1114 = vmatpush2.bf16.msra.mxu0 0
        %1115 = vmatprep.subr.bf16.mxu0 0
        %1116 = vmatpush2.bf16.msra.mxu0 0
        %1117 = vmatprep.subr.bf16.mxu0 0
        %1118 = vmatpush2.bf16.msra.mxu0 0
        %1119 = vmatprep.mubr.bf16.mxu0 0
        %1120 = vmatmul.mubr.bf16.gmra.mxu0 %v1085
        %v1121 = vpop.f32.mrf.mxu0
        %v1122 = vadd.f32 0.0, %v1121
        %v1123 = vpop.f32.mrf.mxu0
        %v1124 = vpop.f32.mrf.mxu0
        %v1125 = vpop.f32.mrf.mxu0
        %1126 = vdwg.mxu0
        %v1128 = vsel %vm992, %v1039, 0
        %1130 = vmatprep.subr.bf16.mxu0 0
        %1131 = vmatpush1.bf16.msra.mxu0 0
        %1132 = vmatprep.subr.bf16.mxu0 0
        %1133 = vmatpush1.bf16.msra.mxu0 0
        %1134 = vmatprep.subr.bf16.mxu0 0
        %1135 = vmatpush1.bf16.msra.mxu0 0
        %1136 = vmatprep.subr.bf16.mxu0 0
        %1137 = vmatpush1.bf16.msra.mxu0 0
        %1138 = vmatprep.subr.bf16.mxu0 0
        %1139 = vmatpush1.bf16.msra.mxu0 0
        %1140 = vmatprep.subr.bf16.mxu0 0
        %1141 = vmatpush1.bf16.msra.mxu0 0
        %1142 = vmatprep.subr.bf16.mxu0 0
        %1143 = vmatpush1.bf16.msra.mxu0 0
        %1144 = vmatprep.subr.bf16.mxu0 0
        %1145 = vmatpush1.bf16.msra.mxu0 %v801
        %1146 = vmatprep.subr.bf16.mxu0 0
        %1147 = vmatpush2.bf16.msra.mxu0 0
        %1148 = vmatprep.subr.bf16.mxu0 0
        %1149 = vmatpush2.bf16.msra.mxu0 0
        %1150 = vmatprep.subr.bf16.mxu0 0
        %1151 = vmatpush2.bf16.msra.mxu0 0
        %1152 = vmatprep.subr.bf16.mxu0 0
        %1153 = vmatpush2.bf16.msra.mxu0 0
        %1154 = vmatprep.subr.bf16.mxu0 0
        %1155 = vmatpush2.bf16.msra.mxu0 0
        %1156 = vmatprep.subr.bf16.mxu0 0
        %1157 = vmatpush2.bf16.msra.mxu0 0
        %1158 = vmatprep.subr.bf16.mxu0 0
        %1159 = vmatpush2.bf16.msra.mxu0 0
        %1160 = vmatprep.subr.bf16.mxu0 0
        %1161 = vmatpush2.bf16.msra.mxu0 0
        %1162 = vmatprep.mubr.bf16.mxu0 0
        %1163 = vmatmul.mubr.bf16.gmra.mxu0 %v1128
        %v1164 = vpop.f32.mrf.mxu0
        %v1165 = vadd.f32 0.0, %v1164
        %v1166 = vpop.f32.mrf.mxu0
        %v1167 = vpop.f32.mrf.mxu0
        %v1168 = vpop.f32.mrf.mxu0
        %1169 = vdwg.mxu0
        %v1171 = vsel %vm992, %v1040, 0
        %1173 = vmatprep.subr.bf16.mxu0 0
        %1174 = vmatpush1.bf16.msra.mxu0 0
        %1175 = vmatprep.subr.bf16.mxu0 0
        %1176 = vmatpush1.bf16.msra.mxu0 0
        %1177 = vmatprep.subr.bf16.mxu0 0
        %1178 = vmatpush1.bf16.msra.mxu0 0
        %1179 = vmatprep.subr.bf16.mxu0 0
        %1180 = vmatpush1.bf16.msra.mxu0 0
        %1181 = vmatprep.subr.bf16.mxu0 0
        %1182 = vmatpush1.bf16.msra.mxu0 0
        %1183 = vmatprep.subr.bf16.mxu0 0
        %1184 = vmatpush1.bf16.msra.mxu0 0
        %1185 = vmatprep.subr.bf16.mxu0 0
        %1186 = vmatpush1.bf16.msra.mxu0 0
        %1187 = vmatprep.subr.bf16.mxu0 0
        %1188 = vmatpush1.bf16.msra.mxu0 %v802
        %1189 = vmatprep.subr.bf16.mxu0 0
        %1190 = vmatpush2.bf16.msra.mxu0 0
        %1191 = vmatprep.subr.bf16.mxu0 0
        %1192 = vmatpush2.bf16.msra.mxu0 0
        %1193 = vmatprep.subr.bf16.mxu0 0
        %1194 = vmatpush2.bf16.msra.mxu0 0
        %1195 = vmatprep.subr.bf16.mxu0 0
        %1196 = vmatpush2.bf16.msra.mxu0 0
        %1197 = vmatprep.subr.bf16.mxu0 0
        %1198 = vmatpush2.bf16.msra.mxu0 0
        %1199 = vmatprep.subr.bf16.mxu0 0
        %1200 = vmatpush2.bf16.msra.mxu0 0
        %1201 = vmatprep.subr.bf16.mxu0 0
        %1202 = vmatpush2.bf16.msra.mxu0 0
        %1203 = vmatprep.subr.bf16.mxu0 0
        %1204 = vmatpush2.bf16.msra.mxu0 0
        %1205 = vmatprep.mubr.bf16.mxu0 0
        %1206 = vmatmul.mubr.bf16.gmra.mxu0 %v1171
        %v1207 = vpop.f32.mrf.mxu0
        %v1208 = vadd.f32 0.0, %v1207
        %v1209 = vpop.f32.mrf.mxu0
        %v1210 = vpop.f32.mrf.mxu0
        %v1211 = vpop.f32.mrf.mxu0
        %1212 = vdwg.mxu0
        %1214 = vrot.lane.b32.xlu0 %v1122, 8
        %v1215 = vpop.permute.xlu0 %1214
        %1218 = vrot.lane.b32.xlu0 %v1165, 16
        %v1219 = vpop.permute.xlu0 %1218
        %1222 = vrot.lane.b32.xlu0 %v1208, 24
        %v1223 = vpop.permute.xlu0 %1222
        %v1225 = vsel %vm803, %v1079, %v1215
        %v1226 = vsel %vm992, %v1225, %v1219
        %vm1227 = vcmask 195584
        %v1228 = vsel %vm1227, %v1226, %v1223
        %v1229 = vadd.f32 %v574, %v1228
        %v1230 = vlaneseq
        %v1231 = vshrl.u32 %v1230, 7
        %v1232 = vsub.s32 3, %v1231
        %v1233 = vrot.slane %v498, %v1232
        %v1235 = vsel %vm503, %v1229, 0
        %1237 = vmatprep.subr.mxu0 0.0
        %1238 = vmatpush1.msra.mxu0 0.0
        %1239 = vmatprep.subr.mxu0 0.0
        %1240 = vmatpush1.msra.mxu0 0.0
        %1241 = vmatprep.subr.mxu0 0.0
        %1242 = vmatpush1.msra.mxu0 0.0
        %1243 = vmatprep.subr.mxu0 0.0
        %1244 = vmatpush1.msra.mxu0 0.0
        %1245 = vmatprep.subr.mxu0 0.0
        %1246 = vmatpush1.msra.mxu0 0.0
        %1247 = vmatprep.subr.mxu0 0.0
        %1248 = vmatpush1.msra.mxu0 0.0
        %1249 = vmatprep.subr.mxu0 0.0
        %1250 = vmatpush1.msra.mxu0 0.0
        %1251 = vmatprep.subr.mxu0 0.0
        %1252 = vmatpush1.msra.mxu0 0.0
        %1253 = vmatprep.subr.mxu0 0.0
        %1254 = vmatpush1.msra.mxu0 0.0
        %1255 = vmatprep.subr.mxu0 0.0
        %1256 = vmatpush1.msra.mxu0 0.0
        %1257 = vmatprep.subr.mxu0 0.0
        %1258 = vmatpush1.msra.mxu0 0.0
        %1259 = vmatprep.subr.mxu0 0.0
        %1260 = vmatpush1.msra.mxu0 0.0
        %1261 = vmatprep.subr.mxu0 0.0
        %1262 = vmatpush1.msra.mxu0 %v497
        %1263 = vmatprep.subr.mxu0 0.0
        %1264 = vmatpush1.msra.mxu0 %v496
        %1265 = vmatprep.subr.mxu0 0.0
        %1266 = vmatpush1.msra.mxu0 %v495
        %1267 = vmatprep.subr.mxu0 0.0
        %1268 = vmatpush1.msra.mxu0 %v494
        %1269 = vmatprep.subr.mxu0 0.0
        %1270 = vmatpush2.msra.mxu0 0.0
        %1271 = vmatprep.subr.mxu0 0.0
        %1272 = vmatpush2.msra.mxu0 0.0
        %1273 = vmatprep.subr.mxu0 0.0
        %1274 = vmatpush2.msra.mxu0 0.0
        %1275 = vmatprep.subr.mxu0 0.0
        %1276 = vmatpush2.msra.mxu0 0.0
        %1277 = vmatprep.subr.mxu0 0.0
        %1278 = vmatpush2.msra.mxu0 0.0
        %1279 = vmatprep.subr.mxu0 0.0
        %1280 = vmatpush2.msra.mxu0 0.0
        %1281 = vmatprep.subr.mxu0 0.0
        %1282 = vmatpush2.msra.mxu0 0.0
        %1283 = vmatprep.subr.mxu0 0.0
        %1284 = vmatpush2.msra.mxu0 0.0
        %1285 = vmatprep.subr.mxu0 0.0
        %1286 = vmatpush2.msra.mxu0 0.0
        %1287 = vmatprep.subr.mxu0 0.0
        %1288 = vmatpush2.msra.mxu0 0.0
        %1289 = vmatprep.subr.mxu0 0.0
        %1290 = vmatpush2.msra.mxu0 0.0
        %1291 = vmatprep.subr.mxu0 0.0
        %1292 = vmatpush2.msra.mxu0 0.0
        %1293 = vmatprep.subr.mxu0 0.0
        %1294 = vmatpush2.msra.mxu0 0.0
        %1295 = vmatprep.subr.mxu0 0.0
        %1296 = vmatpush2.msra.mxu0 0.0
        %1297 = vmatprep.subr.mxu0 0.0
        %1298 = vmatpush2.msra.mxu0 0.0
        %1299 = vmatprep.subr.mxu0 0.0
        %1300 = vmatpush2.msra.mxu0 0.0
        %1301 = vmatprep.mubr.f32.mxu0 0.0
        %1302 = vmatmul.mubr.f32.gmra.mxu0 %v1235
        %v1303 = vpop.f32.mrf.mxu0
        %v1304 = vadd.f32 %v1233, %v1303
        %v1305 = vpop.f32.mrf.mxu0
        %1306 = vdwg.mxu0
        %v1307 = vmax.f32 %v1304, 0.0
        %v1308 = vadd.f32 %v1229, %v1307
        %v1309 = vld [vmem:[#allocation11] sm:$0xff]
        %v1310 = vld [vmem:[#allocation11 + $0x8] sm:$0xff]
        %v1311 = vld [vmem:[#allocation11 + $0x10] sm:$0xff]
        %v1312 = vld [vmem:[#allocation11 + $0x18] sm:$0xff]
        %v1313 = vld [vmem:[#allocation13] sm:$0xff]
        %v1314 = vld [vmem:[#allocation13 + $0x8] sm:$0xff]
        %v1315 = vld [vmem:[#allocation13 + $0x10] sm:$0xff]
        %v1316 = vld [vmem:[#allocation13 + $0x18] sm:$0xff]
        %v1317 = vld [vmem:[#allocation13 + $0x20] sm:$0xff]
        %v1318 = vld [vmem:[#allocation13 + $0x28] sm:$0xff]
        %v1319 = vld [vmem:[#allocation13 + $0x30] sm:$0xff]
        %v1320 = vld [vmem:[#allocation13 + $0x38] sm:$0xff]
        %v1321 = vld [vmem:[#allocation14] sm:$0xff]
        %v1322 = vld [vmem:[#allocation14 + $0x8] sm:$0xff]
        %v1323 = vld [vmem:[#allocation14 + $0x10] sm:$0xff]
        %v1324 = vld [vmem:[#allocation14 + $0x18] sm:$0xff]
        %v1325 = vld [vmem:[%s9] sm:$0xf]
        %v1326 = vlaneseq
        %v1327 = vshrl.u32 %v1326, 7
        %v1328 = vsub.s32 0, %v1327
        %v1329 = vrot.slane %v1325, %v1328
        %1330 = vmatprep.subr.mxu0 0.0
        %1331 = vmatpush1.msra.mxu0 0.0
        %1332 = vmatprep.subr.mxu0 0.0
        %1333 = vmatpush1.msra.mxu0 0.0
        %1334 = vmatprep.subr.mxu0 0.0
        %1335 = vmatpush1.msra.mxu0 0.0
        %1336 = vmatprep.subr.mxu0 0.0
        %1337 = vmatpush1.msra.mxu0 0.0
        %1338 = vmatprep.subr.mxu0 0.0
        %1339 = vmatpush1.msra.mxu0 0.0
        %1340 = vmatprep.subr.mxu0 0.0
        %1341 = vmatpush1.msra.mxu0 0.0
        %1342 = vmatprep.subr.mxu0 0.0
        %1343 = vmatpush1.msra.mxu0 0.0
        %1344 = vmatprep.subr.mxu0 0.0
        %1345 = vmatpush1.msra.mxu0 0.0
        %1346 = vmatprep.subr.mxu0 0.0
        %1347 = vmatpush1.msra.mxu0 0.0
        %1348 = vmatprep.subr.mxu0 0.0
        %1349 = vmatpush1.msra.mxu0 0.0
        %1350 = vmatprep.subr.mxu0 0.0
        %1351 = vmatpush1.msra.mxu0 0.0
        %1352 = vmatprep.subr.mxu0 0.0
        %1353 = vmatpush1.msra.mxu0 0.0
        %1354 = vmatprep.subr.mxu0 0.0
        %1355 = vmatpush1.msra.mxu0 %v1312
        %1356 = vmatprep.subr.mxu0 0.0
        %1357 = vmatpush1.msra.mxu0 %v1311
        %1358 = vmatprep.subr.mxu0 0.0
        %1359 = vmatpush1.msra.mxu0 %v1310
        %1360 = vmatprep.subr.mxu0 0.0
        %1361 = vmatpush1.msra.mxu0 %v1309
        %1362 = vmatprep.subr.mxu0 0.0
        %1363 = vmatpush2.msra.mxu0 0.0
        %1364 = vmatprep.subr.mxu0 0.0
        %1365 = vmatpush2.msra.mxu0 0.0
        %1366 = vmatprep.subr.mxu0 0.0
        %1367 = vmatpush2.msra.mxu0 0.0
        %1368 = vmatprep.subr.mxu0 0.0
        %1369 = vmatpush2.msra.mxu0 0.0
        %1370 = vmatprep.subr.mxu0 0.0
        %1371 = vmatpush2.msra.mxu0 0.0
        %1372 = vmatprep.subr.mxu0 0.0
        %1373 = vmatpush2.msra.mxu0 0.0
        %1374 = vmatprep.subr.mxu0 0.0
        %1375 = vmatpush2.msra.mxu0 0.0
        %1376 = vmatprep.subr.mxu0 0.0
        %1377 = vmatpush2.msra.mxu0 0.0
        %1378 = vmatprep.subr.mxu0 0.0
        %1379 = vmatpush2.msra.mxu0 0.0
        %1380 = vmatprep.subr.mxu0 0.0
        %1381 = vmatpush2.msra.mxu0 0.0
        %1382 = vmatprep.subr.mxu0 0.0
        %1383 = vmatpush2.msra.mxu0 0.0
        %1384 = vmatprep.subr.mxu0 0.0
        %1385 = vmatpush2.msra.mxu0 0.0
        %1386 = vmatprep.subr.mxu0 0.0
        %1387 = vmatpush2.msra.mxu0 0.0
        %1388 = vmatprep.subr.mxu0 0.0
        %1389 = vmatpush2.msra.mxu0 0.0
        %1390 = vmatprep.subr.mxu0 0.0
        %1391 = vmatpush2.msra.mxu0 0.0
        %1392 = vmatprep.subr.mxu0 0.0
        %1393 = vmatpush2.msra.mxu0 0.0
        %1394 = vmatprep.mubr.f32.mxu0 0.0
        %1395 = vmatmul.mubr.f32.gmra.mxu0 %v582
        %v1396 = vpop.f32.mrf.mxu0
        %v1397 = vadd.f32 %v1329, %v1396
        %v1398 = vpop.f32.mrf.mxu0
        %1399 = vmatprep.mubr.f32.mxu0 0.0
        %1400 = vmatmul.mubr.f32.gmra.mxu0 %v585
        %v1401 = vpop.f32.mrf.mxu0
        %v1402 = vadd.f32 %v1329, %v1401
        %v1403 = vpop.f32.mrf.mxu0
        %1404 = vdwg.mxu0
        %v1405 = vlaneseq
        %v1406 = vshrl.u32 %v1405, 7
        %v1407 = vsub.s32 1, %v1406
        %v1408 = vrot.slane %v1325, %v1407
        %v1410 = vsel %vm503, %v1308, 0
        %1412 = vmatprep.subr.mxu0 0.0
        %1413 = vmatpush1.msra.mxu0 0.0
        %1414 = vmatprep.subr.mxu0 0.0
        %1415 = vmatpush1.msra.mxu0 0.0
        %1416 = vmatprep.subr.mxu0 0.0
        %1417 = vmatpush1.msra.mxu0 0.0
        %1418 = vmatprep.subr.mxu0 0.0
        %1419 = vmatpush1.msra.mxu0 0.0
        %1420 = vmatprep.subr.mxu0 0.0
        %1421 = vmatpush1.msra.mxu0 0.0
        %1422 = vmatprep.subr.mxu0 0.0
        %1423 = vmatpush1.msra.mxu0 0.0
        %1424 = vmatprep.subr.mxu0 0.0
        %1425 = vmatpush1.msra.mxu0 0.0
        %1426 = vmatprep.subr.mxu0 0.0
        %1427 = vmatpush1.msra.mxu0 0.0
        %1428 = vmatprep.subr.mxu0 0.0
        %1429 = vmatpush1.msra.mxu0 0.0
        %1430 = vmatprep.subr.mxu0 0.0
        %1431 = vmatpush1.msra.mxu0 0.0
        %1432 = vmatprep.subr.mxu0 0.0
        %1433 = vmatpush1.msra.mxu0 0.0
        %1434 = vmatprep.subr.mxu0 0.0
        %1435 = vmatpush1.msra.mxu0 0.0
        %1436 = vmatprep.subr.mxu0 0.0
        %1437 = vmatpush1.msra.mxu0 %v1316
        %1438 = vmatprep.subr.mxu0 0.0
        %1439 = vmatpush1.msra.mxu0 %v1315
        %1440 = vmatprep.subr.mxu0 0.0
        %1441 = vmatpush1.msra.mxu0 %v1314
        %1442 = vmatprep.subr.mxu0 0.0
        %1443 = vmatpush1.msra.mxu0 %v1313
        %1444 = vmatprep.subr.mxu0 0.0
        %1445 = vmatpush2.msra.mxu0 0.0
        %1446 = vmatprep.subr.mxu0 0.0
        %1447 = vmatpush2.msra.mxu0 0.0
        %1448 = vmatprep.subr.mxu0 0.0
        %1449 = vmatpush2.msra.mxu0 0.0
        %1450 = vmatprep.subr.mxu0 0.0
        %1451 = vmatpush2.msra.mxu0 0.0
        %1452 = vmatprep.subr.mxu0 0.0
        %1453 = vmatpush2.msra.mxu0 0.0
        %1454 = vmatprep.subr.mxu0 0.0
        %1455 = vmatpush2.msra.mxu0 0.0
        %1456 = vmatprep.subr.mxu0 0.0
        %1457 = vmatpush2.msra.mxu0 0.0
        %1458 = vmatprep.subr.mxu0 0.0
        %1459 = vmatpush2.msra.mxu0 0.0
        %1460 = vmatprep.subr.mxu0 0.0
        %1461 = vmatpush2.msra.mxu0 0.0
        %1462 = vmatprep.subr.mxu0 0.0
        %1463 = vmatpush2.msra.mxu0 0.0
        %1464 = vmatprep.subr.mxu0 0.0
        %1465 = vmatpush2.msra.mxu0 0.0
        %1466 = vmatprep.subr.mxu0 0.0
        %1467 = vmatpush2.msra.mxu0 0.0
        %1468 = vmatprep.subr.mxu0 0.0
        %1469 = vmatpush2.msra.mxu0 0.0
        %1470 = vmatprep.subr.mxu0 0.0
        %1471 = vmatpush2.msra.mxu0 0.0
        %1472 = vmatprep.subr.mxu0 0.0
        %1473 = vmatpush2.msra.mxu0 0.0
        %1474 = vmatprep.subr.mxu0 0.0
        %1475 = vmatpush2.msra.mxu0 0.0
        %1476 = vmatprep.mubr.f32.mxu0 0.0
        %1477 = vmatmul.mubr.f32.gmra.mxu0 %v1410
        %v1478 = vpop.f32.mrf.mxu0
        %v1479 = vadd.f32 %v1408, %v1478
        %v1480 = vpop.f32.mrf.mxu0
        %1481 = vdwg.mxu0
        %v1482 = vlaneseq
        %v1483 = vshrl.u32 %v1482, 7
        %v1484 = vsub.s32 2, %v1483
        %v1485 = vrot.slane %v1325, %v1484
        %1486 = vmatprep.subr.mxu0 0.0
        %1487 = vmatpush1.msra.mxu0 0.0
        %1488 = vmatprep.subr.mxu0 0.0
        %1489 = vmatpush1.msra.mxu0 0.0
        %1490 = vmatprep.subr.mxu0 0.0
        %1491 = vmatpush1.msra.mxu0 0.0
        %1492 = vmatprep.subr.mxu0 0.0
        %1493 = vmatpush1.msra.mxu0 0.0
        %1494 = vmatprep.subr.mxu0 0.0
        %1495 = vmatpush1.msra.mxu0 0.0
        %1496 = vmatprep.subr.mxu0 0.0
        %1497 = vmatpush1.msra.mxu0 0.0
        %1498 = vmatprep.subr.mxu0 0.0
        %1499 = vmatpush1.msra.mxu0 0.0
        %1500 = vmatprep.subr.mxu0 0.0
        %1501 = vmatpush1.msra.mxu0 0.0
        %1502 = vmatprep.subr.mxu0 0.0
        %1503 = vmatpush1.msra.mxu0 0.0
        %1504 = vmatprep.subr.mxu0 0.0
        %1505 = vmatpush1.msra.mxu0 0.0
        %1506 = vmatprep.subr.mxu0 0.0
        %1507 = vmatpush1.msra.mxu0 0.0
        %1508 = vmatprep.subr.mxu0 0.0
        %1509 = vmatpush1.msra.mxu0 0.0
        %1510 = vmatprep.subr.mxu0 0.0
        %1511 = vmatpush1.msra.mxu0 %v1320
        %1512 = vmatprep.subr.mxu0 0.0
        %1513 = vmatpush1.msra.mxu0 %v1319
        %1514 = vmatprep.subr.mxu0 0.0
        %1515 = vmatpush1.msra.mxu0 %v1318
        %1516 = vmatprep.subr.mxu0 0.0
        %1517 = vmatpush1.msra.mxu0 %v1317
        %1518 = vmatprep.subr.mxu0 0.0
        %1519 = vmatpush2.msra.mxu0 0.0
        %1520 = vmatprep.subr.mxu0 0.0
        %1521 = vmatpush2.msra.mxu0 0.0
        %1522 = vmatprep.subr.mxu0 0.0
        %1523 = vmatpush2.msra.mxu0 0.0
        %1524 = vmatprep.subr.mxu0 0.0
        %1525 = vmatpush2.msra.mxu0 0.0
        %1526 = vmatprep.subr.mxu0 0.0
        %1527 = vmatpush2.msra.mxu0 0.0
        %1528 = vmatprep.subr.mxu0 0.0
        %1529 = vmatpush2.msra.mxu0 0.0
        %1530 = vmatprep.subr.mxu0 0.0
        %1531 = vmatpush2.msra.mxu0 0.0
        %1532 = vmatprep.subr.mxu0 0.0
        %1533 = vmatpush2.msra.mxu0 0.0
        %1534 = vmatprep.subr.mxu0 0.0
        %1535 = vmatpush2.msra.mxu0 0.0
        %1536 = vmatprep.subr.mxu0 0.0
        %1537 = vmatpush2.msra.mxu0 0.0
        %1538 = vmatprep.subr.mxu0 0.0
        %1539 = vmatpush2.msra.mxu0 0.0
        %1540 = vmatprep.subr.mxu0 0.0
        %1541 = vmatpush2.msra.mxu0 0.0
        %1542 = vmatprep.subr.mxu0 0.0
        %1543 = vmatpush2.msra.mxu0 0.0
        %1544 = vmatprep.subr.mxu0 0.0
        %1545 = vmatpush2.msra.mxu0 0.0
        %1546 = vmatprep.subr.mxu0 0.0
        %1547 = vmatpush2.msra.mxu0 0.0
        %1548 = vmatprep.subr.mxu0 0.0
        %1549 = vmatpush2.msra.mxu0 0.0
        %1550 = vmatprep.mubr.f32.mxu0 0.0
        %1551 = vmatmul.mubr.f32.gmra.mxu0 %v1410
        %v1552 = vpop.f32.mrf.mxu0
        %v1553 = vadd.f32 %v1485, %v1552
        %v1554 = vpop.f32.mrf.mxu0
        %1555 = vdwg.mxu0
        %1558 = vrot.lane.b32.xlu0 %v1397, 120
        %v1559 = vpop.permute.xlu0 %1558
        %1560 = vrot.lane.b32.xlu0 %v1402, 120
        %v1561 = vpop.permute.xlu0 %1560
        %1564 = vrot.lane.b32.xlu0 %v1397, 112
        %v1565 = vpop.permute.xlu0 %1564
        %1566 = vrot.lane.b32.xlu0 %v1402, 112
        %v1567 = vpop.permute.xlu0 %1566
        %1570 = vrot.lane.b32.xlu0 %v1397, 104
        %v1571 = vpop.permute.xlu0 %1570
        %1572 = vrot.lane.b32.xlu0 %v1402, 104
        %v1573 = vpop.permute.xlu0 %1572
        %v1576 = vpack.c.bf16 %v1402, %v1397
        %v1577 = vpack.c.bf16 %v1561, %v1559
        %v1578 = vpack.c.bf16 %v1567, %v1565
        %v1579 = vpack.c.bf16 %v1573, %v1571
        %1581 = vrot.lane.b32.xlu0 %v1479, 120
        %v1582 = vpop.permute.xlu0 %1581
        %1584 = vrot.lane.b32.xlu0 %v1479, 112
        %v1585 = vpop.permute.xlu0 %1584
        %1587 = vrot.lane.b32.xlu0 %v1479, 104
        %v1588 = vpop.permute.xlu0 %1587
        %v1590 = vpack.c.bf16 %v1479, %v1479
        %v1591 = vpack.c.bf16 %v1582, %v1582
        %v1592 = vpack.c.bf16 %v1585, %v1585
        %v1593 = vpack.c.bf16 %v1588, %v1588
        %1595 = vrot.lane.b32.xlu0 %v1553, 120
        %v1596 = vpop.permute.xlu0 %1595
        %1598 = vrot.lane.b32.xlu0 %v1553, 112
        %v1599 = vpop.permute.xlu0 %1598
        %1601 = vrot.lane.b32.xlu0 %v1553, 104
        %v1602 = vpop.permute.xlu0 %1601
        %v1604 = vpack.c.bf16 %v1553, %v1553
        %v1605 = vpack.c.bf16 %v1596, %v1596
        %v1606 = vpack.c.bf16 %v1599, %v1599
        %v1607 = vpack.c.bf16 %v1602, %v1602
        %v1609 = vsel %vm803, %v1576, 0
        %v1612 = vsel %vm803, %v1590, 0
        %1614 = vmatprep.subr.bf16.mxu0 0
        %1615 = vmatpush1.bf16.xpose.msra.mxu0 0
        %1616 = vmatprep.subr.bf16.mxu0 0
        %1617 = vmatpush1.bf16.xpose.msra.mxu0 0
        %1618 = vmatprep.subr.bf16.mxu0 0
        %1619 = vmatpush1.bf16.xpose.msra.mxu0 0
        %1620 = vmatprep.subr.bf16.mxu0 0
        %1621 = vmatpush1.bf16.xpose.msra.mxu0 0
        %1622 = vmatprep.subr.bf16.mxu0 0
        %1623 = vmatpush1.bf16.xpose.msra.mxu0 0
        %1624 = vmatprep.subr.bf16.mxu0 0
        %1625 = vmatpush1.bf16.xpose.msra.mxu0 0
        %1626 = vmatprep.subr.bf16.mxu0 0
        %1627 = vmatpush1.bf16.xpose.msra.mxu0 0
        %1628 = vmatprep.subr.bf16.mxu0 0
        %1629 = vmatpush1.bf16.xpose.msra.mxu0 %v1612
        %1630 = vmatprep.subr.bf16.mxu0 0
        %1631 = vmatpush2.bf16.xpose.msra.mxu0 0
        %1632 = vmatprep.subr.bf16.mxu0 0
        %1633 = vmatpush2.bf16.xpose.msra.mxu0 0
        %1634 = vmatprep.subr.bf16.mxu0 0
        %1635 = vmatpush2.bf16.xpose.msra.mxu0 0
        %1636 = vmatprep.subr.bf16.mxu0 0
        %1637 = vmatpush2.bf16.xpose.msra.mxu0 0
        %1638 = vmatprep.subr.bf16.mxu0 0
        %1639 = vmatpush2.bf16.xpose.msra.mxu0 0
        %1640 = vmatprep.subr.bf16.mxu0 0
        %1641 = vmatpush2.bf16.xpose.msra.mxu0 0
        %1642 = vmatprep.subr.bf16.mxu0 0
        %1643 = vmatpush2.bf16.xpose.msra.mxu0 0
        %1644 = vmatprep.subr.bf16.mxu0 0
        %1645 = vmatpush2.bf16.xpose.msra.mxu0 0
        %1646 = vmatprep.mubr.bf16.mxu0 0
        %1647 = vmatmul.mubr.bf16.gmra.mxu0 %v1609
        %v1648 = vpop.f32.mrf.mxu0
        %v1649 = vadd.f32 0.0, %v1648
        %v1650 = vpop.f32.mrf.mxu0
        %v1651 = vpop.f32.mrf.mxu0
        %v1652 = vadd.f32 0.0, %v1651
        %v1653 = vpop.f32.mrf.mxu0
        %1654 = vdwg.mxu0
        %v1656 = vsel %vm803, %v1577, 0
        %v1659 = vsel %vm803, %v1591, 0
        %1661 = vmatprep.subr.bf16.mxu0 0
        %1662 = vmatpush1.bf16.xpose.msra.mxu0 0
        %1663 = vmatprep.subr.bf16.mxu0 0
        %1664 = vmatpush1.bf16.xpose.msra.mxu0 0
        %1665 = vmatprep.subr.bf16.mxu0 0
        %1666 = vmatpush1.bf16.xpose.msra.mxu0 0
        %1667 = vmatprep.subr.bf16.mxu0 0
        %1668 = vmatpush1.bf16.xpose.msra.mxu0 0
        %1669 = vmatprep.subr.bf16.mxu0 0
        %1670 = vmatpush1.bf16.xpose.msra.mxu0 0
        %1671 = vmatprep.subr.bf16.mxu0 0
        %1672 = vmatpush1.bf16.xpose.msra.mxu0 0
        %1673 = vmatprep.subr.bf16.mxu0 0
        %1674 = vmatpush1.bf16.xpose.msra.mxu0 0
        %1675 = vmatprep.subr.bf16.mxu0 0
        %1676 = vmatpush1.bf16.xpose.msra.mxu0 %v1659
        %1677 = vmatprep.subr.bf16.mxu0 0
        %1678 = vmatpush2.bf16.xpose.msra.mxu0 0
        %1679 = vmatprep.subr.bf16.mxu0 0
        %1680 = vmatpush2.bf16.xpose.msra.mxu0 0
        %1681 = vmatprep.subr.bf16.mxu0 0
        %1682 = vmatpush2.bf16.xpose.msra.mxu0 0
        %1683 = vmatprep.subr.bf16.mxu0 0
        %1684 = vmatpush2.bf16.xpose.msra.mxu0 0
        %1685 = vmatprep.subr.bf16.mxu0 0
        %1686 = vmatpush2.bf16.xpose.msra.mxu0 0
        %1687 = vmatprep.subr.bf16.mxu0 0
        %1688 = vmatpush2.bf16.xpose.msra.mxu0 0
        %1689 = vmatprep.subr.bf16.mxu0 0
        %1690 = vmatpush2.bf16.xpose.msra.mxu0 0
        %1691 = vmatprep.subr.bf16.mxu0 0
        %1692 = vmatpush2.bf16.xpose.msra.mxu0 0
        %1693 = vmatprep.mubr.bf16.mxu0 0
        %1694 = vmatmul.mubr.bf16.gmra.mxu0 %v1656
        %v1695 = vpop.f32.mrf.mxu0
        %v1696 = vadd.f32 0.0, %v1695
        %v1697 = vpop.f32.mrf.mxu0
        %v1698 = vpop.f32.mrf.mxu0
        %v1699 = vadd.f32 0.0, %v1698
        %v1700 = vpop.f32.mrf.mxu0
        %1701 = vdwg.mxu0
        %v1703 = vsel %vm803, %v1578, 0
        %v1706 = vsel %vm803, %v1592, 0
        %1708 = vmatprep.subr.bf16.mxu0 0
        %1709 = vmatpush1.bf16.xpose.msra.mxu0 0
        %1710 = vmatprep.subr.bf16.mxu0 0
        %1711 = vmatpush1.bf16.xpose.msra.mxu0 0
        %1712 = vmatprep.subr.bf16.mxu0 0
        %1713 = vmatpush1.bf16.xpose.msra.mxu0 0
        %1714 = vmatprep.subr.bf16.mxu0 0
        %1715 = vmatpush1.bf16.xpose.msra.mxu0 0
        %1716 = vmatprep.subr.bf16.mxu0 0
        %1717 = vmatpush1.bf16.xpose.msra.mxu0 0
        %1718 = vmatprep.subr.bf16.mxu0 0
        %1719 = vmatpush1.bf16.xpose.msra.mxu0 0
        %1720 = vmatprep.subr.bf16.mxu0 0
        %1721 = vmatpush1.bf16.xpose.msra.mxu0 0
        %1722 = vmatprep.subr.bf16.mxu0 0
        %1723 = vmatpush1.bf16.xpose.msra.mxu0 %v1706
        %1724 = vmatprep.subr.bf16.mxu0 0
        %1725 = vmatpush2.bf16.xpose.msra.mxu0 0
        %1726 = vmatprep.subr.bf16.mxu0 0
        %1727 = vmatpush2.bf16.xpose.msra.mxu0 0
        %1728 = vmatprep.subr.bf16.mxu0 0
        %1729 = vmatpush2.bf16.xpose.msra.mxu0 0
        %1730 = vmatprep.subr.bf16.mxu0 0
        %1731 = vmatpush2.bf16.xpose.msra.mxu0 0
        %1732 = vmatprep.subr.bf16.mxu0 0
        %1733 = vmatpush2.bf16.xpose.msra.mxu0 0
        %1734 = vmatprep.subr.bf16.mxu0 0
        %1735 = vmatpush2.bf16.xpose.msra.mxu0 0
        %1736 = vmatprep.subr.bf16.mxu0 0
        %1737 = vmatpush2.bf16.xpose.msra.mxu0 0
        %1738 = vmatprep.subr.bf16.mxu0 0
        %1739 = vmatpush2.bf16.xpose.msra.mxu0 0
        %1740 = vmatprep.mubr.bf16.mxu0 0
        %1741 = vmatmul.mubr.bf16.gmra.mxu0 %v1703
        %v1742 = vpop.f32.mrf.mxu0
        %v1743 = vadd.f32 0.0, %v1742
        %v1744 = vpop.f32.mrf.mxu0
        %v1745 = vpop.f32.mrf.mxu0
        %v1746 = vadd.f32 0.0, %v1745
        %v1747 = vpop.f32.mrf.mxu0
        %1748 = vdwg.mxu0
        %v1750 = vsel %vm803, %v1579, 0
        %v1753 = vsel %vm803, %v1593, 0
        %1755 = vmatprep.subr.bf16.mxu0 0
        %1756 = vmatpush1.bf16.xpose.msra.mxu0 0
        %1757 = vmatprep.subr.bf16.mxu0 0
        %1758 = vmatpush1.bf16.xpose.msra.mxu0 0
        %1759 = vmatprep.subr.bf16.mxu0 0
        %1760 = vmatpush1.bf16.xpose.msra.mxu0 0
        %1761 = vmatprep.subr.bf16.mxu0 0
        %1762 = vmatpush1.bf16.xpose.msra.mxu0 0
        %1763 = vmatprep.subr.bf16.mxu0 0
        %1764 = vmatpush1.bf16.xpose.msra.mxu0 0
        %1765 = vmatprep.subr.bf16.mxu0 0
        %1766 = vmatpush1.bf16.xpose.msra.mxu0 0
        %1767 = vmatprep.subr.bf16.mxu0 0
        %1768 = vmatpush1.bf16.xpose.msra.mxu0 0
        %1769 = vmatprep.subr.bf16.mxu0 0
        %1770 = vmatpush1.bf16.xpose.msra.mxu0 %v1753
        %1771 = vmatprep.subr.bf16.mxu0 0
        %1772 = vmatpush2.bf16.xpose.msra.mxu0 0
        %1773 = vmatprep.subr.bf16.mxu0 0
        %1774 = vmatpush2.bf16.xpose.msra.mxu0 0
        %1775 = vmatprep.subr.bf16.mxu0 0
        %1776 = vmatpush2.bf16.xpose.msra.mxu0 0
        %1777 = vmatprep.subr.bf16.mxu0 0
        %1778 = vmatpush2.bf16.xpose.msra.mxu0 0
        %1779 = vmatprep.subr.bf16.mxu0 0
        %1780 = vmatpush2.bf16.xpose.msra.mxu0 0
        %1781 = vmatprep.subr.bf16.mxu0 0
        %1782 = vmatpush2.bf16.xpose.msra.mxu0 0
        %1783 = vmatprep.subr.bf16.mxu0 0
        %1784 = vmatpush2.bf16.xpose.msra.mxu0 0
        %1785 = vmatprep.subr.bf16.mxu0 0
        %1786 = vmatpush2.bf16.xpose.msra.mxu0 0
        %1787 = vmatprep.mubr.bf16.mxu0 0
        %1788 = vmatmul.mubr.bf16.gmra.mxu0 %v1750
        %v1789 = vpop.f32.mrf.mxu0
        %v1790 = vadd.f32 0.0, %v1789
        %v1791 = vpop.f32.mrf.mxu0
        %v1792 = vpop.f32.mrf.mxu0
        %v1793 = vadd.f32 0.0, %v1792
        %v1794 = vpop.f32.mrf.mxu0
        %1795 = vdwg.mxu0
        %v1796 = vmul.f32 %v1649, 0.17677669
        %v1797 = vmul.f32 %v1652, 0.17677669
        %v1798 = vmul.f32 %v1696, 0.17677669
        %v1799 = vmul.f32 %v1699, 0.17677669
        %v1800 = vmul.f32 %v1743, 0.17677669
        %v1801 = vmul.f32 %v1746, 0.17677669
        %v1802 = vmul.f32 %v1790, 0.17677669
        %v1803 = vmul.f32 %v1793, 0.17677669
        %v1804 = vsel %vm803, %v1796, -inf
        %1805 = vmax.xlane.f32.xlu0 %v1804
        %v1806 = vpop.xlane.xlu0 %1805
        %v1807 = vsel %vm803, %v1797, -inf
        %1808 = vmax.xlane.f32.xlu0 %v1807
        %v1809 = vpop.xlane.xlu0 %1808
        %v1810 = vsel %vm803, %v1798, -inf
        %1811 = vmax.xlane.f32.xlu0 %v1810
        %v1812 = vpop.xlane.xlu0 %1811
        %v1813 = vsel %vm803, %v1799, -inf
        %1814 = vmax.xlane.f32.xlu0 %v1813
        %v1815 = vpop.xlane.xlu0 %1814
        %v1816 = vsel %vm803, %v1800, -inf
        %1817 = vmax.xlane.f32.xlu0 %v1816
        %v1818 = vpop.xlane.xlu0 %1817
        %v1819 = vsel %vm803, %v1801, -inf
        %1820 = vmax.xlane.f32.xlu0 %v1819
        %v1821 = vpop.xlane.xlu0 %1820
        %v1822 = vsel %vm803, %v1802, -inf
        %1823 = vmax.xlane.f32.xlu0 %v1822
        %v1824 = vpop.xlane.xlu0 %1823
        %v1825 = vsel %vm803, %v1803, -inf
        %1826 = vmax.xlane.f32.xlu0 %v1825
        %v1827 = vpop.xlane.xlu0 %1826
        %v1828 = vsub.f32 %v1796, %v1806
        %v1829 = vsub.f32 %v1797, %v1809
        %v1830 = vsub.f32 %v1798, %v1812
        %v1831 = vsub.f32 %v1799, %v1815
        %v1832 = vsub.f32 %v1800, %v1818
        %v1833 = vsub.f32 %v1801, %v1821
        %v1834 = vsub.f32 %v1802, %v1824
        %v1835 = vsub.f32 %v1803, %v1827
        %v1836 = vmul.f32 %v1828, 1.442695
        %v1837 = vpow.pop %v1836
        %v1838 = vmul.f32 %v1829, 1.442695
        %v1839 = vpow.pop %v1838
        %v1840 = vmul.f32 %v1830, 1.442695
        %v1841 = vpow.pop %v1840
        %v1842 = vmul.f32 %v1831, 1.442695
        %v1843 = vpow.pop %v1842
        %v1844 = vmul.f32 %v1832, 1.442695
        %v1845 = vpow.pop %v1844
        %v1846 = vmul.f32 %v1833, 1.442695
        %v1847 = vpow.pop %v1846
        %v1848 = vmul.f32 %v1834, 1.442695
        %v1849 = vpow.pop %v1848
        %v1850 = vmul.f32 %v1835, 1.442695
        %v1851 = vpow.pop %v1850
        %v1852 = vsel %vm803, %v1837, 0.0
        %1853 = vadd.xlane.f32.xlu0 %v1852
        %v1854 = vpop.xlane.xlu0 %1853
        %v1855 = vsel %vm803, %v1839, 0.0
        %1856 = vadd.xlane.f32.xlu0 %v1855
        %v1857 = vpop.xlane.xlu0 %1856
        %v1858 = vsel %vm803, %v1841, 0.0
        %1859 = vadd.xlane.f32.xlu0 %v1858
        %v1860 = vpop.xlane.xlu0 %1859
        %v1861 = vsel %vm803, %v1843, 0.0
        %1862 = vadd.xlane.f32.xlu0 %v1861
        %v1863 = vpop.xlane.xlu0 %1862
        %v1864 = vsel %vm803, %v1845, 0.0
        %1865 = vadd.xlane.f32.xlu0 %v1864
        %v1866 = vpop.xlane.xlu0 %1865
        %v1867 = vsel %vm803, %v1847, 0.0
        %1868 = vadd.xlane.f32.xlu0 %v1867
        %v1869 = vpop.xlane.xlu0 %1868
        %v1870 = vsel %vm803, %v1849, 0.0
        %1871 = vadd.xlane.f32.xlu0 %v1870
        %v1872 = vpop.xlane.xlu0 %1871
        %v1873 = vsel %vm803, %v1851, 0.0
        %1874 = vadd.xlane.f32.xlu0 %v1873
        %v1875 = vpop.xlane.xlu0 %1874
        %v1876 = vrcp.pop %v1854
        %v1877 = vrcp.pop %v1857
        %v1878 = vrcp.pop %v1860
        %v1879 = vrcp.pop %v1863
        %v1880 = vrcp.pop %v1866
        %v1881 = vrcp.pop %v1869
        %v1882 = vrcp.pop %v1872
        %v1883 = vrcp.pop %v1875
        %v1884 = vmul.f32 %v1837, %v1876
        %v1885 = vmul.f32 %v1839, %v1877
        %v1886 = vmul.f32 %v1841, %v1878
        %v1887 = vmul.f32 %v1843, %v1879
        %v1888 = vmul.f32 %v1845, %v1880
        %v1889 = vmul.f32 %v1847, %v1881
        %v1890 = vmul.f32 %v1849, %v1882
        %v1891 = vmul.f32 %v1851, %v1883
        %v1892 = vpack.c.bf16 %v1885, %v1884
        %v1893 = vpack.c.bf16 %v1887, %v1886
        %v1894 = vpack.c.bf16 %v1889, %v1888
        %v1895 = vpack.c.bf16 %v1891, %v1890
        %v1897 = vsel %vm803, %v1892, 0
        %vm1899 = vcmask 1043456
        %v1901 = vsel %vm1899, %v1604, 0
        %1903 = vmatprep.subr.bf16.mxu0 0
        %1904 = vmatpush1.bf16.msra.mxu0 0
        %1905 = vmatprep.subr.bf16.mxu0 0
        %1906 = vmatpush1.bf16.msra.mxu0 0
        %1907 = vmatprep.subr.bf16.mxu0 0
        %1908 = vmatpush1.bf16.msra.mxu0 0
        %1909 = vmatprep.subr.bf16.mxu0 0
        %1910 = vmatpush1.bf16.msra.mxu0 0
        %1911 = vmatprep.subr.bf16.mxu0 0
        %1912 = vmatpush1.bf16.msra.mxu0 0
        %1913 = vmatprep.subr.bf16.mxu0 0
        %1914 = vmatpush1.bf16.msra.mxu0 0
        %1915 = vmatprep.subr.bf16.mxu0 0
        %1916 = vmatpush1.bf16.msra.mxu0 0
        %1917 = vmatprep.subr.bf16.mxu0 0
        %1918 = vmatpush1.bf16.msra.mxu0 %v1901
        %1919 = vmatprep.subr.bf16.mxu0 0
        %1920 = vmatpush2.bf16.msra.mxu0 0
        %1921 = vmatprep.subr.bf16.mxu0 0
        %1922 = vmatpush2.bf16.msra.mxu0 0
        %1923 = vmatprep.subr.bf16.mxu0 0
        %1924 = vmatpush2.bf16.msra.mxu0 0
        %1925 = vmatprep.subr.bf16.mxu0 0
        %1926 = vmatpush2.bf16.msra.mxu0 0
        %1927 = vmatprep.subr.bf16.mxu0 0
        %1928 = vmatpush2.bf16.msra.mxu0 0
        %1929 = vmatprep.subr.bf16.mxu0 0
        %1930 = vmatpush2.bf16.msra.mxu0 0
        %1931 = vmatprep.subr.bf16.mxu0 0
        %1932 = vmatpush2.bf16.msra.mxu0 0
        %1933 = vmatprep.subr.bf16.mxu0 0
        %1934 = vmatpush2.bf16.msra.mxu0 0
        %1935 = vmatprep.mubr.bf16.mxu0 0
        %1936 = vmatmul.mubr.bf16.gmra.mxu0 %v1897
        %v1937 = vpop.f32.mrf.mxu0
        %v1938 = vadd.f32 0.0, %v1937
        %v1939 = vpop.f32.mrf.mxu0
        %v1940 = vpop.f32.mrf.mxu0
        %v1941 = vadd.f32 0.0, %v1940
        %v1942 = vpop.f32.mrf.mxu0
        %1943 = vdwg.mxu0
        %v1945 = vsel %vm803, %v1893, 0
        %v1948 = vsel %vm1899, %v1605, 0
        %1950 = vmatprep.subr.bf16.mxu0 0
        %1951 = vmatpush1.bf16.msra.mxu0 0
        %1952 = vmatprep.subr.bf16.mxu0 0
        %1953 = vmatpush1.bf16.msra.mxu0 0
        %1954 = vmatprep.subr.bf16.mxu0 0
        %1955 = vmatpush1.bf16.msra.mxu0 0
        %1956 = vmatprep.subr.bf16.mxu0 0
        %1957 = vmatpush1.bf16.msra.mxu0 0
        %1958 = vmatprep.subr.bf16.mxu0 0
        %1959 = vmatpush1.bf16.msra.mxu0 0
        %1960 = vmatprep.subr.bf16.mxu0 0
        %1961 = vmatpush1.bf16.msra.mxu0 0
        %1962 = vmatprep.subr.bf16.mxu0 0
        %1963 = vmatpush1.bf16.msra.mxu0 0
        %1964 = vmatprep.subr.bf16.mxu0 0
        %1965 = vmatpush1.bf16.msra.mxu0 %v1948
        %1966 = vmatprep.subr.bf16.mxu0 0
        %1967 = vmatpush2.bf16.msra.mxu0 0
        %1968 = vmatprep.subr.bf16.mxu0 0
        %1969 = vmatpush2.bf16.msra.mxu0 0
        %1970 = vmatprep.subr.bf16.mxu0 0
        %1971 = vmatpush2.bf16.msra.mxu0 0
        %1972 = vmatprep.subr.bf16.mxu0 0
        %1973 = vmatpush2.bf16.msra.mxu0 0
        %1974 = vmatprep.subr.bf16.mxu0 0
        %1975 = vmatpush2.bf16.msra.mxu0 0
        %1976 = vmatprep.subr.bf16.mxu0 0
        %1977 = vmatpush2.bf16.msra.mxu0 0
        %1978 = vmatprep.subr.bf16.mxu0 0
        %1979 = vmatpush2.bf16.msra.mxu0 0
        %1980 = vmatprep.subr.bf16.mxu0 0
        %1981 = vmatpush2.bf16.msra.mxu0 0
        %1982 = vmatprep.mubr.bf16.mxu0 0
        %1983 = vmatmul.mubr.bf16.gmra.mxu0 %v1945
        %v1984 = vpop.f32.mrf.mxu0
        %v1985 = vadd.f32 0.0, %v1984
        %v1986 = vpop.f32.mrf.mxu0
        %v1987 = vpop.f32.mrf.mxu0
        %v1988 = vadd.f32 0.0, %v1987
        %v1989 = vpop.f32.mrf.mxu0
        %1990 = vdwg.mxu0
        %v1992 = vsel %vm803, %v1894, 0
        %v1995 = vsel %vm1899, %v1606, 0
        %1997 = vmatprep.subr.bf16.mxu0 0
        %1998 = vmatpush1.bf16.msra.mxu0 0
        %1999 = vmatprep.subr.bf16.mxu0 0
        %2000 = vmatpush1.bf16.msra.mxu0 0
        %2001 = vmatprep.subr.bf16.mxu0 0
        %2002 = vmatpush1.bf16.msra.mxu0 0
        %2003 = vmatprep.subr.bf16.mxu0 0
        %2004 = vmatpush1.bf16.msra.mxu0 0
        %2005 = vmatprep.subr.bf16.mxu0 0
        %2006 = vmatpush1.bf16.msra.mxu0 0
        %2007 = vmatprep.subr.bf16.mxu0 0
        %2008 = vmatpush1.bf16.msra.mxu0 0
        %2009 = vmatprep.subr.bf16.mxu0 0
        %2010 = vmatpush1.bf16.msra.mxu0 0
        %2011 = vmatprep.subr.bf16.mxu0 0
        %2012 = vmatpush1.bf16.msra.mxu0 %v1995
        %2013 = vmatprep.subr.bf16.mxu0 0
        %2014 = vmatpush2.bf16.msra.mxu0 0
        %2015 = vmatprep.subr.bf16.mxu0 0
        %2016 = vmatpush2.bf16.msra.mxu0 0
        %2017 = vmatprep.subr.bf16.mxu0 0
        %2018 = vmatpush2.bf16.msra.mxu0 0
        %2019 = vmatprep.subr.bf16.mxu0 0
        %2020 = vmatpush2.bf16.msra.mxu0 0
        %2021 = vmatprep.subr.bf16.mxu0 0
        %2022 = vmatpush2.bf16.msra.mxu0 0
        %2023 = vmatprep.subr.bf16.mxu0 0
        %2024 = vmatpush2.bf16.msra.mxu0 0
        %2025 = vmatprep.subr.bf16.mxu0 0
        %2026 = vmatpush2.bf16.msra.mxu0 0
        %2027 = vmatprep.subr.bf16.mxu0 0
        %2028 = vmatpush2.bf16.msra.mxu0 0
        %2029 = vmatprep.mubr.bf16.mxu0 0
        %2030 = vmatmul.mubr.bf16.gmra.mxu0 %v1992
        %v2031 = vpop.f32.mrf.mxu0
        %v2032 = vadd.f32 0.0, %v2031
        %v2033 = vpop.f32.mrf.mxu0
        %v2034 = vpop.f32.mrf.mxu0
        %v2035 = vadd.f32 0.0, %v2034
        %v2036 = vpop.f32.mrf.mxu0
        %2037 = vdwg.mxu0
        %v2039 = vsel %vm803, %v1895, 0
        %v2042 = vsel %vm1899, %v1607, 0
        %2044 = vmatprep.subr.bf16.mxu0 0
        %2045 = vmatpush1.bf16.msra.mxu0 0
        %2046 = vmatprep.subr.bf16.mxu0 0
        %2047 = vmatpush1.bf16.msra.mxu0 0
        %2048 = vmatprep.subr.bf16.mxu0 0
        %2049 = vmatpush1.bf16.msra.mxu0 0
        %2050 = vmatprep.subr.bf16.mxu0 0
        %2051 = vmatpush1.bf16.msra.mxu0 0
        %2052 = vmatprep.subr.bf16.mxu0 0
        %2053 = vmatpush1.bf16.msra.mxu0 0
        %2054 = vmatprep.subr.bf16.mxu0 0
        %2055 = vmatpush1.bf16.msra.mxu0 0
        %2056 = vmatprep.subr.bf16.mxu0 0
        %2057 = vmatpush1.bf16.msra.mxu0 0
        %2058 = vmatprep.subr.bf16.mxu0 0
        %2059 = vmatpush1.bf16.msra.mxu0 %v2042
        %2060 = vmatprep.subr.bf16.mxu0 0
        %2061 = vmatpush2.bf16.msra.mxu0 0
        %2062 = vmatprep.subr.bf16.mxu0 0
        %2063 = vmatpush2.bf16.msra.mxu0 0
        %2064 = vmatprep.subr.bf16.mxu0 0
        %2065 = vmatpush2.bf16.msra.mxu0 0
        %2066 = vmatprep.subr.bf16.mxu0 0
        %2067 = vmatpush2.bf16.msra.mxu0 0
        %2068 = vmatprep.subr.bf16.mxu0 0
        %2069 = vmatpush2.bf16.msra.mxu0 0
        %2070 = vmatprep.subr.bf16.mxu0 0
        %2071 = vmatpush2.bf16.msra.mxu0 0
        %2072 = vmatprep.subr.bf16.mxu0 0
        %2073 = vmatpush2.bf16.msra.mxu0 0
        %2074 = vmatprep.subr.bf16.mxu0 0
        %2075 = vmatpush2.bf16.msra.mxu0 0
        %2076 = vmatprep.mubr.bf16.mxu0 0
        %2077 = vmatmul.mubr.bf16.gmra.mxu0 %v2039
        %v2078 = vpop.f32.mrf.mxu0
        %v2079 = vadd.f32 0.0, %v2078
        %v2080 = vpop.f32.mrf.mxu0
        %v2081 = vpop.f32.mrf.mxu0
        %v2082 = vadd.f32 0.0, %v2081
        %v2083 = vpop.f32.mrf.mxu0
        %2084 = vdwg.mxu0
        %2087 = vrot.lane.b32.xlu0 %v1985, 8
        %v2088 = vpop.permute.xlu0 %2087
        %2089 = vrot.lane.b32.xlu0 %v1988, 8
        %v2090 = vpop.permute.xlu0 %2089
        %2095 = vrot.lane.b32.xlu0 %v2032, 16
        %v2096 = vpop.permute.xlu0 %2095
        %2097 = vrot.lane.b32.xlu0 %v2035, 16
        %v2098 = vpop.permute.xlu0 %2097
        %2103 = vrot.lane.b32.xlu0 %v2079, 24
        %v2104 = vpop.permute.xlu0 %2103
        %2105 = vrot.lane.b32.xlu0 %v2082, 24
        %v2106 = vpop.permute.xlu0 %2105
        %v2109 = vsel %vm803, %v1938, %v2088
        %v2110 = vsel %vm803, %v1941, %v2090
        %v2111 = vsel %vm992, %v2109, %v2096
        %v2112 = vsel %vm992, %v2110, %v2098
        %v2113 = vsel %vm1227, %v2111, %v2104
        %v2114 = vsel %vm1227, %v2112, %v2106
        %v2115 = vadd.f32 %v1397, %v2113
        %v2116 = vadd.f32 %v1402, %v2114
        %v2117 = vlaneseq
        %v2118 = vshrl.u32 %v2117, 7
        %v2119 = vsub.s32 3, %v2118
        %v2120 = vrot.slane %v1325, %v2119
        %v2122 = vsel %vm503, %v2115, 0
        %v2125 = vsel %vm503, %v2116, 0
        %2127 = vmatprep.subr.mxu0 0.0
        %2128 = vmatpush1.msra.mxu0 0.0
        %2129 = vmatprep.subr.mxu0 0.0
        %2130 = vmatpush1.msra.mxu0 0.0
        %2131 = vmatprep.subr.mxu0 0.0
        %2132 = vmatpush1.msra.mxu0 0.0
        %2133 = vmatprep.subr.mxu0 0.0
        %2134 = vmatpush1.msra.mxu0 0.0
        %2135 = vmatprep.subr.mxu0 0.0
        %2136 = vmatpush1.msra.mxu0 0.0
        %2137 = vmatprep.subr.mxu0 0.0
        %2138 = vmatpush1.msra.mxu0 0.0
        %2139 = vmatprep.subr.mxu0 0.0
        %2140 = vmatpush1.msra.mxu0 0.0
        %2141 = vmatprep.subr.mxu0 0.0
        %2142 = vmatpush1.msra.mxu0 0.0
        %2143 = vmatprep.subr.mxu0 0.0
        %2144 = vmatpush1.msra.mxu0 0.0
        %2145 = vmatprep.subr.mxu0 0.0
        %2146 = vmatpush1.msra.mxu0 0.0
        %2147 = vmatprep.subr.mxu0 0.0
        %2148 = vmatpush1.msra.mxu0 0.0
        %2149 = vmatprep.subr.mxu0 0.0
        %2150 = vmatpush1.msra.mxu0 0.0
        %2151 = vmatprep.subr.mxu0 0.0
        %2152 = vmatpush1.msra.mxu0 %v1324
        %2153 = vmatprep.subr.mxu0 0.0
        %2154 = vmatpush1.msra.mxu0 %v1323
        %2155 = vmatprep.subr.mxu0 0.0
        %2156 = vmatpush1.msra.mxu0 %v1322
        %2157 = vmatprep.subr.mxu0 0.0
        %2158 = vmatpush1.msra.mxu0 %v1321
        %2159 = vmatprep.subr.mxu0 0.0
        %2160 = vmatpush2.msra.mxu0 0.0
        %2161 = vmatprep.subr.mxu0 0.0
        %2162 = vmatpush2.msra.mxu0 0.0
        %2163 = vmatprep.subr.mxu0 0.0
        %2164 = vmatpush2.msra.mxu0 0.0
        %2165 = vmatprep.subr.mxu0 0.0
        %2166 = vmatpush2.msra.mxu0 0.0
        %2167 = vmatprep.subr.mxu0 0.0
        %2168 = vmatpush2.msra.mxu0 0.0
        %2169 = vmatprep.subr.mxu0 0.0
        %2170 = vmatpush2.msra.mxu0 0.0
        %2171 = vmatprep.subr.mxu0 0.0
        %2172 = vmatpush2.msra.mxu0 0.0
        %2173 = vmatprep.subr.mxu0 0.0
        %2174 = vmatpush2.msra.mxu0 0.0
        %2175 = vmatprep.subr.mxu0 0.0
        %2176 = vmatpush2.msra.mxu0 0.0
        %2177 = vmatprep.subr.mxu0 0.0
        %2178 = vmatpush2.msra.mxu0 0.0
        %2179 = vmatprep.subr.mxu0 0.0
        %2180 = vmatpush2.msra.mxu0 0.0
        %2181 = vmatprep.subr.mxu0 0.0
        %2182 = vmatpush2.msra.mxu0 0.0
        %2183 = vmatprep.subr.mxu0 0.0
        %2184 = vmatpush2.msra.mxu0 0.0
        %2185 = vmatprep.subr.mxu0 0.0
        %2186 = vmatpush2.msra.mxu0 0.0
        %2187 = vmatprep.subr.mxu0 0.0
        %2188 = vmatpush2.msra.mxu0 0.0
        %2189 = vmatprep.subr.mxu0 0.0
        %2190 = vmatpush2.msra.mxu0 0.0
        %2191 = vmatprep.mubr.f32.mxu0 0.0
        %2192 = vmatmul.mubr.f32.gmra.mxu0 %v2122
        %v2193 = vpop.f32.mrf.mxu0
        %v2194 = vadd.f32 %v2120, %v2193
        %v2195 = vpop.f32.mrf.mxu0
        %2196 = vmatprep.mubr.f32.mxu0 0.0
        %2197 = vmatmul.mubr.f32.gmra.mxu0 %v2125
        %v2198 = vpop.f32.mrf.mxu0
        %v2199 = vadd.f32 %v2120, %v2198
        %v2200 = vpop.f32.mrf.mxu0
        %2201 = vdwg.mxu0
        %v2202 = vmax.f32 %v2194, 0.0
        %v2203 = vmax.f32 %v2199, 0.0
        %v2204 = vadd.f32 %v2115, %v2202
        %v2205 = vadd.f32 %v2116, %v2203
        %2206 = vst.msk [vmem:[%s477] sm:$0xff] %vm503, %v2204
        %2207 = vst.msk [vmem:[%s477 + $0x8] sm:$0xff] %vm503, %v2205
        %s2208 = sand.u32 %s254, 1
        %s2209 = scalar_lea.sflag [#allocation4], %s2208
        %s2210 = sand.u32 %s254, 1
        %s2211 = smul.addr %s2210, 16
        %s2212 = scalar_lea.vmem [#allocation16], %s2211
        // Predicated region
        $region93: #{tpu_custom_call.1} parent=59 // pred_check
          %p2213 = pneg %p264
        $region94: #{tpu_custom_call.1} parent=59 // pred_check_branch
          %2215 = sbr.rel (%p2213) target = $region96
        $region95: #{tpu_custom_call.1} parent=59 // pred_region
          %s2217 = ssub.s32 256, 256
          %2218 = vsyncadd %s2209, %s2217
          %s2219 = smul.addr %s31, 2
          %s2220 = smul.addr %s2219, 128
          %s2221 = scalar_lea.hbm %s10, %s2220
          %s2222 = sshll.u32 %s2212, 4
          %s2223 = int_to_ptr.vmem [resolvable:$true] %s2222
          %2228 = dma.vmem_to_hbm [thread:$0]  %s2223, 256, %s2221, %s2209, 128, 128, 8
        $region96: #{tpu_custom_call.1} parent=59 // pred_fallthru
          _
      $region60: #{tpu_custom_call.1} parent=5 // pred_fallthru
        _
      %p2229 = scmp.le.s32.totalorder 2, %s26
      // Predicated region
      $region97: #{tpu_custom_call.1} parent=5 // pred_check
        %p2230 = pneg %p2229
      $region98: #{tpu_custom_call.1} parent=5 // pred_check_branch
        %2232 = sbr.rel (%p2230) target = $region100
      $region99: #{tpu_custom_call.1} parent=5 // pred_region
        %s2233 = ssub.s32 %s26, 2
        // Predicated region
        $region101: #{tpu_custom_call.1} parent=99 // pred_check
          %p2234 = pneg %p270
        $region102: #{tpu_custom_call.1} parent=99 // pred_check_branch
          %2236 = sbr.rel (%p2234) target = $region104
        $region103: #{tpu_custom_call.1} parent=99 // pred_region
          %s2237 = sand.u32 %s255, 1
          %s2238 = scalar_lea.sflag [#allocation4], %s2237
          %s2239 = sand.u32 %s255, 1
          %s2240 = smul.addr %s2239, 16
          %s2241 = scalar_lea.vmem [#allocation16], %s2240
          %2242 = dma.done %s2238, 256
        $region104: #{tpu_custom_call.1} parent=99 // pred_fallthru
          _
      $region100: #{tpu_custom_call.1} parent=5 // pred_fallthru
        _
    $region6: #{tpu_custom_call.1} parent=1 // loop_footer
      %s30 = sadd.s32 1, %s26
    $region7: #{tpu_custom_call.1} parent=1 // loop_footer_branch
      %25 = sbr.rel target = $region3
    $region8: #{tpu_custom_call.1} parent=1 // loop_exit
      _
    %2243 = vsyncpa [#allocation3], 1
    %s2244 = scalar_lea.sflag [#allocation3], 1
    %2245 = vsyncpa %s2244, 1
    %2246 = vsyncpa [#allocation6], 1
    %2247 = vsyncpa [#allocation9], 1
    %2248 = vsyncpa [#allocation12], 1
    %2249 = vsyncpa [#allocation15], 1
    %2250 = vsyncpa [#allocation4], 1
    %s2251 = scalar_lea.sflag [#allocation4], 1
    %2252 = vsyncpa %s2251, 1

</llo_original>
